<compile_context>
chip_gen: v7x
topology: tpu7x:2x2x1
jax: 0.10.0
libtpu: 0.0.40
codegen_flags: <defaults>
</compile_context>

<pallas_src>
import jax
import jax.numpy as jnp
from jax import lax
from jax.experimental import pallas as pl
from jax.experimental.pallas import tpu as pltpu

# ---------------- config (small synthetic shapes) ----------------
B = 2        # batch
K = 8        # num_objs
D = 32       # obj_dim
BDIM = 4     # b_dim (unused by forward, mirroring the PyTorch module)
S = 8        # seq_length
VOCAB = 50   # vocabulary size
E = 32       # word-embedding dim
H = 32       # GRU hidden size  (q_emb dim)
A = 32       # attention hidden size
NH = 32      # num_hid (q_net / v_net output dim)
C = 16       # number of answer classes

# ---------------- static parameter-slab layout ----------------
# Each entry: (name, (rows, cols)); placed at an 8-row-aligned offset of a
# [SLAB_ROWS, 128] f32 slab. Offsets are plain Python ints -> static slices.
SLAB_ENTRIES = (
    ('emb_wih', (VOCAB, 3 * H)),     # emb @ [W_ir | W_iz | W_in]
    ('bi',      (1, 3 * H)),         # [b_ir+b_hr | b_iz+b_hz | b_in]
    ('bhn',     (1, H)),             # b_hn
    ('whh',     (H, 3 * H)),         # [W_hr | W_hz | W_hn]
    ('att_wv',  (D, A)),
    ('att_bv',  (1, A)),
    ('wq_cat',  (H, A + NH)),        # [att_wq | qnet_w]
    ('bq_cat',  (1, A + NH)),        # [att_bq | qnet_b]
    ('wa_row',  (1, A)),             # att_wa transposed (att_ba cancels in softmax)
    ('vnet_w',  (D, NH)),
    ('vnet_b',  (1, NH)),
    ('cls_w1',  (NH, 2 * NH)),
    ('cls_b1',  (1, 2 * NH)),
    ('cls_w2',  (2 * NH, C)),
    ('cls_b2',  (1, C)),
)


def _build_layout():
    layout = {}
    row = 0
    for name, (r, c) in SLAB_ENTRIES:
        layout[name] = (row, r, c)
        row += r + (-r % 8)          # keep every param 8-sublane aligned
    return layout, row


SLAB_LAYOUT, SLAB_ROWS = _build_layout()
SLAB_COLS = 128


# ---------------- the single fused Pallas kernel ----------------
def fused_base_model_kernel(qcol_ref, v_ref, slab_ref, out_ref):
    f32 = jnp.float32
    bf16 = jnp.bfloat16

    def getp(name):
        row, r, c = SLAB_LAYOUT[name]
        return slab_ref[pl.ds(row, r), pl.ds(0, c)]

    # ---- 1+2. embedding folded into GRU input projection ----
    # qcol: [S*B, 1] int32, row index = t*B + b (time-major).
    q_ids = qcol_ref[...]
    onehot = (lax.broadcasted_iota(jnp.int32, (S * B, VOCAB), 1) == q_ids).astype(f32)
    x_proj = jnp.dot(onehot, getp('emb_wih'),
                     preferred_element_type=f32) + getp('bi')          # [S*B, 3H]

    whh_bf = getp('whh').astype(bf16)                                  # [H, 3H] (bf16 MXU operand)
    b_hn = getp('bhn')                                                 # [1, H]
    h = jnp.zeros((B, H), f32)
    for t in range(S):                           # static full unroll (S=8)
        xp = x_proj[t * B:(t + 1) * B, :]                              # [B, 3H]
        hp = jnp.dot(h.astype(bf16), whh_bf,
                     preferred_element_type=f32)                       # [B, 3H], f32 accum
        rz = jax.nn.sigmoid(xp[:, :2 * H] + hp[:, :2 * H])             # fused r|z sigmoid
        r = rz[:, :H]
        z = rz[:, H:]
        n = jnp.tanh(xp[:, 2 * H:] + r * (hp[:, 2 * H:] + b_hn))
        h = (1.0 - z) * n + z * h
    q_emb = h                                                          # [B, H]

    # ---- 3. top-down attention + pooling ----
    v_flat = v_ref[...].reshape(B * K, D)                              # layout no-op
    v_proj = jnp.maximum(
        jnp.dot(v_flat, getp('att_wv'), preferred_element_type=f32)
        + getp('att_bv'), 0.0)                                         # [B*K, A]
    # att q-projection and q_net fused into one matmul (both ReLU on q_emb)
    q_both = jnp.maximum(
        jnp.dot(q_emb, getp('wq_cat'), preferred_element_type=f32)
        + getp('bq_cat'), 0.0)                                         # [B, A+NH]
    q_proj = q_both[:, :A]                                             # [B, A]
    q_repr = q_both[:, A:]                                             # [B, NH]

    wa = getp('wa_row')                                                # [1, A]
    pooled = []
    for bi in range(B):                          # static unroll; softmax over this batch's K objs
        vp = v_proj[bi * K:(bi + 1) * K, :]                            # [K, A]
        joint_att = vp * q_proj[bi:bi + 1, :]                          # sublane broadcast
        sc = jnp.sum(joint_att * wa, axis=-1, keepdims=True)           # [K, 1] lane reduce
        e = jnp.exp(sc - jnp.max(sc, axis=0, keepdims=True))
        att = e / jnp.sum(e, axis=0, keepdims=True)                    # [K, 1]
        pooled.append(jnp.sum(att * v_flat[bi * K:(bi + 1) * K, :],
                              axis=0, keepdims=True))                  # [1, D]
    v_emb = jnp.concatenate(pooled, axis=0)                            # [B, D]

    # ---- 4. v_net / joint fusion / classifier ----
    v_repr = jnp.maximum(
        jnp.dot(v_emb, getp('vnet_w'), preferred_element_type=f32)
        + getp('vnet_b'), 0.0)                                         # [B, NH]
    joint = q_repr * v_repr                                            # [B, NH]
    hid = jnp.maximum(
        jnp.dot(joint, getp('cls_w1'), preferred_element_type=f32)
        + getp('cls_b1'), 0.0)                                         # [B, 2NH]
    logits = jnp.dot(hid, getp('cls_w2'),
                     preferred_element_type=f32) + getp('cls_b2')      # [B, C]

    # single merged output store: [joint | logits]
    out_ref[...] = jnp.concatenate([joint, logits], axis=-1)


# ---------------- Pallas wrapper (gridless, everything VMEM-resident) ----------------
def fused_call(q_col, v, slab):
    vmem = pltpu.MemorySpace.VMEM
    out = pl.pallas_call(
        fused_base_model_kernel,
        out_shape=jax.ShapeDtypeStruct((B, NH + C), jnp.float32),
        in_specs=[pl.BlockSpec(memory_space=vmem)] * 3,
        out_specs=pl.BlockSpec(memory_space=vmem),
        cost_estimate=pl.CostEstimate(flops=330_000, transcendentals=1_600,
                                      bytes_accessed=190_000),
    )(q_col, v, slab)
    logits = out[:, NH:]
    joint_repr = out[:, :NH]
    return logits, joint_repr


# ---------------- model forward ----------------
@jax.jit
def base_model_forward(slab, v, b, q, labels):
    """v: [B, K, D]; b: [B, K, BDIM]; q: [B, S] int32; labels unused (as in PyTorch)."""
    del b, labels                       # not used by the PyTorch forward either
    # time-major index column (row = t*B + b); pure int plumbing, 16 ints
    q_col = q.T.reshape(S * B, 1).astype(jnp.int32)
    return fused_call(q_col, v, slab)


# ---------------- deterministic parameter init (PyTorch-style layout) ----------------
def init_params(key):
    ks = jax.random.split(key, 12)

    def dense(k, shape):
        fan_in = shape[-2]
        return jax.random.normal(k, shape, jnp.float32) / jnp.sqrt(float(fan_in))

    return {
        'emb':     0.1 * jax.random.normal(ks[0], (VOCAB, E), jnp.float32),
        'gru_wih': dense(ks[1], (3, E, H)),
        'gru_whh': dense(ks[2], (3, H, H)),
        'gru_bih': 0.1 * jax.random.normal(ks[10], (3, 1, H), jnp.float32),
        'gru_bhh': 0.1 * jax.random.normal(ks[11], (3, 1, H), jnp.float32),
        'att_wv':  dense(ks[3], (D, A)),
        'att_bv':  jnp.zeros((1, A), jnp.float32),
        'att_wq':  dense(ks[4], (H, A)),
        'att_bq':  jnp.zeros((1, A), jnp.float32),
        'att_wa':  dense(ks[5], (A, 1)),
        'att_ba':  0.3 * jnp.ones((1, 1), jnp.float32),   # cancels in softmax; dropped in kernel
        'qnet_w':  dense(ks[6], (H, NH)),
        'qnet_b':  0.01 * jnp.ones((1, NH), jnp.float32),
        'vnet_w':  dense(ks[7], (D, NH)),
        'vnet_b':  0.01 * jnp.ones((1, NH), jnp.float32),
        'cls_w1':  dense(ks[8], (NH, 2 * NH)),
        'cls_b1':  0.01 * jnp.ones((1, 2 * NH), jnp.float32),
        'cls_w2':  dense(ks[9], (2 * NH, C)),
        'cls_b2':  jnp.zeros((1, C), jnp.float32),
    }


def fuse_params(p):
    """One-time re-layout of PyTorch-style params into a single padded VMEM slab."""
    wih = jnp.concatenate([p['gru_wih'][0], p['gru_wih'][1], p['gru_wih'][2]], axis=1)   # [E,3H]
    whh = jnp.concatenate([p['gru_whh'][0], p['gru_whh'][1], p['gru_whh'][2]], axis=1)   # [H,3H]
    bi = jnp.concatenate([p['gru_bih'][0] + p['gru_bhh'][0],
                          p['gru_bih'][1] + p['gru_bhh'][1],
                          p['gru_bih'][2]], axis=1)                                      # [1,3H]
    tensors = {
        'emb_wih': p['emb'] @ wih,                                   # embedding folded offline
        'bi':      bi,
        'bhn':     p['gru_bhh'][2],
        'whh':     whh,
        'att_wv':  p['att_wv'],
        'att_bv':  p['att_bv'],
        'wq_cat':  jnp.concatenate([p['att_wq'], p['qnet_w']], axis=1),
        'bq_cat':  jnp.concatenate([p['att_bq'], p['qnet_b']], axis=1),
        'wa_row':  p['att_wa'].T,                                    # att_ba intentionally dropped
        'vnet_w':  p['vnet_w'],
        'vnet_b':  p['vnet_b'],
        'cls_w1':  p['cls_w1'],
        'cls_b1':  p['cls_b1'],
        'cls_w2':  p['cls_w2'],
        'cls_b2':  p['cls_b2'],
    }
    slab = jnp.zeros((SLAB_ROWS, SLAB_COLS), jnp.float32)
    for name, (r, c) in SLAB_ENTRIES:
        row, rr, cc = SLAB_LAYOUT[name]
        arr = tensors[name]
        assert arr.shape == (r, c), (name, arr.shape, (r, c))
        slab = slab.at[row:row + r, :c].set(arr)
    return slab


# ---------------- pure-JAX reference for validation (unfused layout) ----------------
def reference_forward(p, v, q):
    w_emb = p['emb'][q]                                  # [B, S, E]
    h = jnp.zeros((q.shape[0], H), jnp.float32)
    for t in range(S):
        x_t = w_emb[:, t, :]
        r = jax.nn.sigmoid(x_t @ p['gru_wih'][0] + p['gru_bih'][0]
                           + h @ p['gru_whh'][0] + p['gru_bhh'][0])
        z = jax.nn.sigmoid(x_t @ p['gru_wih'][1] + p['gru_bih'][1]
                           + h @ p['gru_whh'][1] + p['gru_bhh'][1])
        n = jnp.tanh(x_t @ p['gru_wih'][2] + p['gru_bih'][2]
                     + r * (h @ p['gru_whh'][2] + p['gru_bhh'][2]))
        h = (1.0 - z) * n + z * h
    q_emb = h
    v_proj = jax.nn.relu(v @ p['att_wv'] + p['att_bv'])              # [B, K, A]
    q_proj = jax.nn.relu(q_emb @ p['att_wq'] + p['att_bq'])          # [B, A]
    scores = (v_proj * q_proj[:, None, :]) @ p['att_wa'] + p['att_ba']   # [B, K, 1]
    att = jax.nn.softmax(scores, axis=1)
    v_emb = (att * v).sum(1)
    q_repr = jax.nn.relu(q_emb @ p['qnet_w'] + p['qnet_b'])
    v_repr = jax.nn.relu(v_emb @ p['vnet_w'] + p['vnet_b'])
    joint = q_repr * v_repr
    hid = jax.nn.relu(joint @ p['cls_w1'] + p['cls_b1'])
    logits = hid @ p['cls_w2'] + p['cls_b2']
    return logits, joint


if __name__ == "__main__":
    key = jax.random.PRNGKey(0)
    kp, kv, kb, kq = jax.random.split(key, 4)
    params = init_params(kp)
    slab = fuse_params(params)
    v = jax.random.normal(kv, (B, K, D), jnp.float32)
    b = jax.random.normal(kb, (B, K, BDIM), jnp.float32)
    q = jax.random.randint(kq, (B, S), 0, VOCAB, dtype=jnp.int32)
    labels = jnp.zeros((B, C), jnp.float32)   # unused by forward, mirrors PyTorch signature

    logits, joint_repr = base_model_forward(slab, v, b, q, labels)
    jax.block_until_ready((logits, joint_repr))

    ref_logits, ref_joint = reference_forward(params, v, q)
    assert logits.shape == (B, C) and joint_repr.shape == (B, NH)
    # Tolerance slightly relaxed vs f32-only version: the recurrent matmul now
    # runs with bf16 MXU operands (f32 accumulation), per perf feedback.
    assert jnp.allclose(logits, ref_logits, atol=2e-2, rtol=2e-2)
    assert jnp.allclose(joint_repr, ref_joint, atol=2e-2, rtol=2e-2)
    print("KERNEL_OK")
</pallas_src>

<mosaic_0001>
module attributes {stable_mosaic.version = 11 : i64} {
  func.func @fused_base_model_kernel(%arg0: memref<16x1xi32, #tpu.memory_space<vmem>>, %arg1: memref<2x8x32xf32, #tpu.memory_space<vmem>>, %arg2: memref<344x128xf32, #tpu.memory_space<vmem>>, %arg3: memref<2x48xf32, #tpu.memory_space<vmem>>) attributes {dimension_semantics = [], scalar_prefetch = 0 : i64, scratch_operands = 0 : i64, tpu.core_type = #tpu.core_type<tc>} {
    %c0 = arith.constant 0 : index
    %c0_0 = arith.constant 0 : index
    %0 = vector.load %arg0[%c0, %c0_0] : memref<16x1xi32, #tpu.memory_space<vmem>>, vector<16x1xi32>
    %1 = tpu.iota {dimensions = array<i32: 1>} : vector<16x50xi32>
    %2 = vector.broadcast %0 : vector<16x1xi32> to vector<16x50xi32>
    %3 = arith.cmpi eq, %1, %2 : vector<16x50xi32>
    %4 = arith.extui %3 : vector<16x50xi1> to vector<16x50xi32>
    %5 = arith.sitofp %4 : vector<16x50xi32> to vector<16x50xf32>
    %c0_1 = arith.constant 0 : index
    %c0_2 = arith.constant 0 : index
    %6 = vector.load %arg2[%c0_1, %c0_2] : memref<344x128xf32, #tpu.memory_space<vmem>>, vector<50x96xf32>
    %cst = arith.constant dense<0.000000e+00> : vector<16x96xf32>
    %7 = tpu.matmul %5, %6, %cst {dimension_numbers = #tpu.dot_dimension_numbers<[1], [0], [0], [1], [0, 0, 1, 1], [], []>} : vector<16x50xf32>, vector<50x96xf32>, vector<16x96xf32> -> vector<16x96xf32>
    %c56 = arith.constant 56 : index
    %c0_3 = arith.constant 0 : index
    %8 = vector.load %arg2[%c56, %c0_3] : memref<344x128xf32, #tpu.memory_space<vmem>>, vector<1x96xf32>
    %9 = vector.broadcast %8 : vector<1x96xf32> to vector<16x96xf32>
    %10 = arith.addf %7, %9 : vector<16x96xf32>
    %c72 = arith.constant 72 : index
    %c0_4 = arith.constant 0 : index
    %11 = vector.load %arg2[%c72, %c0_4] : memref<344x128xf32, #tpu.memory_space<vmem>>, vector<32x96xf32>
    %12 = arith.truncf %11 : vector<32x96xf32> to vector<32x96xbf16>
    %c64 = arith.constant 64 : index
    %c0_5 = arith.constant 0 : index
    %13 = vector.load %arg2[%c64, %c0_5] : memref<344x128xf32, #tpu.memory_space<vmem>>, vector<1x32xf32>
    %cst_6 = arith.constant 0.000000e+00 : f32
    %14 = vector.broadcast %cst_6 : f32 to vector<2x32xf32>
    %15 = vector.extract_strided_slice %10 {offsets = [0, 0], sizes = [2, 96], strides = [1, 1]} : vector<16x96xf32> to vector<2x96xf32>
    %16 = arith.truncf %14 : vector<2x32xf32> to vector<2x32xbf16>
    %cst_7 = arith.constant dense<0.000000e+00> : vector<2x96xf32>
    %17 = tpu.matmul %16, %12, %cst_7 {dimension_numbers = #tpu.dot_dimension_numbers<[1], [0], [0], [1], [0, 0, 1, 1], [], []>} : vector<2x32xbf16>, vector<32x96xbf16>, vector<2x96xf32> -> vector<2x96xf32>
    %18 = vector.extract_strided_slice %15 {offsets = [0, 0], sizes = [2, 64], strides = [1, 1]} : vector<2x96xf32> to vector<2x64xf32>
    %19 = vector.extract_strided_slice %17 {offsets = [0, 0], sizes = [2, 64], strides = [1, 1]} : vector<2x96xf32> to vector<2x64xf32>
    %20 = arith.addf %18, %19 : vector<2x64xf32>
    %21 = arith.negf %20 : vector<2x64xf32>
    %22 = math.exp %21 : vector<2x64xf32>
    %cst_8 = arith.constant 1.000000e+00 : f32
    %23 = vector.broadcast %cst_8 : f32 to vector<2x64xf32>
    %24 = arith.addf %23, %22 : vector<2x64xf32>
    %25 = arith.divf %23, %24 : vector<2x64xf32>
    %26 = vector.extract_strided_slice %25 {offsets = [0, 0], sizes = [2, 32], strides = [1, 1]} : vector<2x64xf32> to vector<2x32xf32>
    %27 = vector.extract_strided_slice %25 {offsets = [0, 32], sizes = [2, 32], strides = [1, 1]} : vector<2x64xf32> to vector<2x32xf32>
    %28 = vector.extract_strided_slice %15 {offsets = [0, 64], sizes = [2, 32], strides = [1, 1]} : vector<2x96xf32> to vector<2x32xf32>
    %29 = vector.extract_strided_slice %17 {offsets = [0, 64], sizes = [2, 32], strides = [1, 1]} : vector<2x96xf32> to vector<2x32xf32>
    %30 = vector.broadcast %13 : vector<1x32xf32> to vector<2x32xf32>
    %31 = arith.addf %29, %30 : vector<2x32xf32>
    %32 = arith.mulf %26, %31 : vector<2x32xf32>
    %33 = arith.addf %28, %32 : vector<2x32xf32>
    %34 = math.tanh %33 : vector<2x32xf32>
    %cst_9 = arith.constant 1.000000e+00 : f32
    %35 = vector.broadcast %cst_9 : f32 to vector<2x32xf32>
    %36 = arith.subf %35, %27 : vector<2x32xf32>
    %37 = arith.mulf %36, %34 : vector<2x32xf32>
    %38 = arith.mulf %27, %14 : vector<2x32xf32>
    %39 = arith.addf %37, %38 : vector<2x32xf32>
    %40 = vector.extract_strided_slice %10 {offsets = [2, 0], sizes = [2, 96], strides = [1, 1]} : vector<16x96xf32> to vector<2x96xf32>
    %41 = arith.truncf %39 : vector<2x32xf32> to vector<2x32xbf16>
    %cst_10 = arith.constant dense<0.000000e+00> : vector<2x96xf32>
    %42 = tpu.matmul %41, %12, %cst_10 {dimension_numbers = #tpu.dot_dimension_numbers<[1], [0], [0], [1], [0, 0, 1, 1], [], []>} : vector<2x32xbf16>, vector<32x96xbf16>, vector<2x96xf32> -> vector<2x96xf32>
    %43 = vector.extract_strided_slice %40 {offsets = [0, 0], sizes = [2, 64], strides = [1, 1]} : vector<2x96xf32> to vector<2x64xf32>
    %44 = vector.extract_strided_slice %42 {offsets = [0, 0], sizes = [2, 64], strides = [1, 1]} : vector<2x96xf32> to vector<2x64xf32>
    %45 = arith.addf %43, %44 : vector<2x64xf32>
    %46 = arith.negf %45 : vector<2x64xf32>
    %47 = math.exp %46 : vector<2x64xf32>
    %cst_11 = arith.constant 1.000000e+00 : f32
    %48 = vector.broadcast %cst_11 : f32 to vector<2x64xf32>
    %49 = arith.addf %48, %47 : vector<2x64xf32>
    %50 = arith.divf %48, %49 : vector<2x64xf32>
    %51 = vector.extract_strided_slice %50 {offsets = [0, 0], sizes = [2, 32], strides = [1, 1]} : vector<2x64xf32> to vector<2x32xf32>
    %52 = vector.extract_strided_slice %50 {offsets = [0, 32], sizes = [2, 32], strides = [1, 1]} : vector<2x64xf32> to vector<2x32xf32>
    %53 = vector.extract_strided_slice %40 {offsets = [0, 64], sizes = [2, 32], strides = [1, 1]} : vector<2x96xf32> to vector<2x32xf32>
    %54 = vector.extract_strided_slice %42 {offsets = [0, 64], sizes = [2, 32], strides = [1, 1]} : vector<2x96xf32> to vector<2x32xf32>
    %55 = vector.broadcast %13 : vector<1x32xf32> to vector<2x32xf32>
    %56 = arith.addf %54, %55 : vector<2x32xf32>
    %57 = arith.mulf %51, %56 : vector<2x32xf32>
    %58 = arith.addf %53, %57 : vector<2x32xf32>
    %59 = math.tanh %58 : vector<2x32xf32>
    %cst_12 = arith.constant 1.000000e+00 : f32
    %60 = vector.broadcast %cst_12 : f32 to vector<2x32xf32>
    %61 = arith.subf %60, %52 : vector<2x32xf32>
    %62 = arith.mulf %61, %59 : vector<2x32xf32>
    %63 = arith.mulf %52, %39 : vector<2x32xf32>
    %64 = arith.addf %62, %63 : vector<2x32xf32>
    %65 = vector.extract_strided_slice %10 {offsets = [4, 0], sizes = [2, 96], strides = [1, 1]} : vector<16x96xf32> to vector<2x96xf32>
    %66 = arith.truncf %64 : vector<2x32xf32> to vector<2x32xbf16>
    %cst_13 = arith.constant dense<0.000000e+00> : vector<2x96xf32>
    %67 = tpu.matmul %66, %12, %cst_13 {dimension_numbers = #tpu.dot_dimension_numbers<[1], [0], [0], [1], [0, 0, 1, 1], [], []>} : vector<2x32xbf16>, vector<32x96xbf16>, vector<2x96xf32> -> vector<2x96xf32>
    %68 = vector.extract_strided_slice %65 {offsets = [0, 0], sizes = [2, 64], strides = [1, 1]} : vector<2x96xf32> to vector<2x64xf32>
    %69 = vector.extract_strided_slice %67 {offsets = [0, 0], sizes = [2, 64], strides = [1, 1]} : vector<2x96xf32> to vector<2x64xf32>
    %70 = arith.addf %68, %69 : vector<2x64xf32>
    %71 = arith.negf %70 : vector<2x64xf32>
    %72 = math.exp %71 : vector<2x64xf32>
    %cst_14 = arith.constant 1.000000e+00 : f32
    %73 = vector.broadcast %cst_14 : f32 to vector<2x64xf32>
    %74 = arith.addf %73, %72 : vector<2x64xf32>
    %75 = arith.divf %73, %74 : vector<2x64xf32>
    %76 = vector.extract_strided_slice %75 {offsets = [0, 0], sizes = [2, 32], strides = [1, 1]} : vector<2x64xf32> to vector<2x32xf32>
    %77 = vector.extract_strided_slice %75 {offsets = [0, 32], sizes = [2, 32], strides = [1, 1]} : vector<2x64xf32> to vector<2x32xf32>
    %78 = vector.extract_strided_slice %65 {offsets = [0, 64], sizes = [2, 32], strides = [1, 1]} : vector<2x96xf32> to vector<2x32xf32>
    %79 = vector.extract_strided_slice %67 {offsets = [0, 64], sizes = [2, 32], strides = [1, 1]} : vector<2x96xf32> to vector<2x32xf32>
    %80 = vector.broadcast %13 : vector<1x32xf32> to vector<2x32xf32>
    %81 = arith.addf %79, %80 : vector<2x32xf32>
    %82 = arith.mulf %76, %81 : vector<2x32xf32>
    %83 = arith.addf %78, %82 : vector<2x32xf32>
    %84 = math.tanh %83 : vector<2x32xf32>
    %cst_15 = arith.constant 1.000000e+00 : f32
    %85 = vector.broadcast %cst_15 : f32 to vector<2x32xf32>
    %86 = arith.subf %85, %77 : vector<2x32xf32>
    %87 = arith.mulf %86, %84 : vector<2x32xf32>
    %88 = arith.mulf %77, %64 : vector<2x32xf32>
    %89 = arith.addf %87, %88 : vector<2x32xf32>
    %90 = vector.extract_strided_slice %10 {offsets = [6, 0], sizes = [2, 96], strides = [1, 1]} : vector<16x96xf32> to vector<2x96xf32>
    %91 = arith.truncf %89 : vector<2x32xf32> to vector<2x32xbf16>
    %cst_16 = arith.constant dense<0.000000e+00> : vector<2x96xf32>
    %92 = tpu.matmul %91, %12, %cst_16 {dimension_numbers = #tpu.dot_dimension_numbers<[1], [0], [0], [1], [0, 0, 1, 1], [], []>} : vector<2x32xbf16>, vector<32x96xbf16>, vector<2x96xf32> -> vector<2x96xf32>
    %93 = vector.extract_strided_slice %90 {offsets = [0, 0], sizes = [2, 64], strides = [1, 1]} : vector<2x96xf32> to vector<2x64xf32>
    %94 = vector.extract_strided_slice %92 {offsets = [0, 0], sizes = [2, 64], strides = [1, 1]} : vector<2x96xf32> to vector<2x64xf32>
    %95 = arith.addf %93, %94 : vector<2x64xf32>
    %96 = arith.negf %95 : vector<2x64xf32>
    %97 = math.exp %96 : vector<2x64xf32>
    %cst_17 = arith.constant 1.000000e+00 : f32
    %98 = vector.broadcast %cst_17 : f32 to vector<2x64xf32>
    %99 = arith.addf %98, %97 : vector<2x64xf32>
    %100 = arith.divf %98, %99 : vector<2x64xf32>
    %101 = vector.extract_strided_slice %100 {offsets = [0, 0], sizes = [2, 32], strides = [1, 1]} : vector<2x64xf32> to vector<2x32xf32>
    %102 = vector.extract_strided_slice %100 {offsets = [0, 32], sizes = [2, 32], strides = [1, 1]} : vector<2x64xf32> to vector<2x32xf32>
    %103 = vector.extract_strided_slice %90 {offsets = [0, 64], sizes = [2, 32], strides = [1, 1]} : vector<2x96xf32> to vector<2x32xf32>
    %104 = vector.extract_strided_slice %92 {offsets = [0, 64], sizes = [2, 32], strides = [1, 1]} : vector<2x96xf32> to vector<2x32xf32>
    %105 = vector.broadcast %13 : vector<1x32xf32> to vector<2x32xf32>
    %106 = arith.addf %104, %105 : vector<2x32xf32>
    %107 = arith.mulf %101, %106 : vector<2x32xf32>
    %108 = arith.addf %103, %107 : vector<2x32xf32>
    %109 = math.tanh %108 : vector<2x32xf32>
    %cst_18 = arith.constant 1.000000e+00 : f32
    %110 = vector.broadcast %cst_18 : f32 to vector<2x32xf32>
    %111 = arith.subf %110, %102 : vector<2x32xf32>
    %112 = arith.mulf %111, %109 : vector<2x32xf32>
    %113 = arith.mulf %102, %89 : vector<2x32xf32>
    %114 = arith.addf %112, %113 : vector<2x32xf32>
    %115 = vector.extract_strided_slice %10 {offsets = [8, 0], sizes = [2, 96], strides = [1, 1]} : vector<16x96xf32> to vector<2x96xf32>
    %116 = arith.truncf %114 : vector<2x32xf32> to vector<2x32xbf16>
    %cst_19 = arith.constant dense<0.000000e+00> : vector<2x96xf32>
    %117 = tpu.matmul %116, %12, %cst_19 {dimension_numbers = #tpu.dot_dimension_numbers<[1], [0], [0], [1], [0, 0, 1, 1], [], []>} : vector<2x32xbf16>, vector<32x96xbf16>, vector<2x96xf32> -> vector<2x96xf32>
    %118 = vector.extract_strided_slice %115 {offsets = [0, 0], sizes = [2, 64], strides = [1, 1]} : vector<2x96xf32> to vector<2x64xf32>
    %119 = vector.extract_strided_slice %117 {offsets = [0, 0], sizes = [2, 64], strides = [1, 1]} : vector<2x96xf32> to vector<2x64xf32>
    %120 = arith.addf %118, %119 : vector<2x64xf32>
    %121 = arith.negf %120 : vector<2x64xf32>
    %122 = math.exp %121 : vector<2x64xf32>
    %cst_20 = arith.constant 1.000000e+00 : f32
    %123 = vector.broadcast %cst_20 : f32 to vector<2x64xf32>
    %124 = arith.addf %123, %122 : vector<2x64xf32>
    %125 = arith.divf %123, %124 : vector<2x64xf32>
    %126 = vector.extract_strided_slice %125 {offsets = [0, 0], sizes = [2, 32], strides = [1, 1]} : vector<2x64xf32> to vector<2x32xf32>
    %127 = vector.extract_strided_slice %125 {offsets = [0, 32], sizes = [2, 32], strides = [1, 1]} : vector<2x64xf32> to vector<2x32xf32>
    %128 = vector.extract_strided_slice %115 {offsets = [0, 64], sizes = [2, 32], strides = [1, 1]} : vector<2x96xf32> to vector<2x32xf32>
    %129 = vector.extract_strided_slice %117 {offsets = [0, 64], sizes = [2, 32], strides = [1, 1]} : vector<2x96xf32> to vector<2x32xf32>
    %130 = vector.broadcast %13 : vector<1x32xf32> to vector<2x32xf32>
    %131 = arith.addf %129, %130 : vector<2x32xf32>
    %132 = arith.mulf %126, %131 : vector<2x32xf32>
    %133 = arith.addf %128, %132 : vector<2x32xf32>
    %134 = math.tanh %133 : vector<2x32xf32>
    %cst_21 = arith.constant 1.000000e+00 : f32
    %135 = vector.broadcast %cst_21 : f32 to vector<2x32xf32>
    %136 = arith.subf %135, %127 : vector<2x32xf32>
    %137 = arith.mulf %136, %134 : vector<2x32xf32>
    %138 = arith.mulf %127, %114 : vector<2x32xf32>
    %139 = arith.addf %137, %138 : vector<2x32xf32>
    %140 = vector.extract_strided_slice %10 {offsets = [10, 0], sizes = [2, 96], strides = [1, 1]} : vector<16x96xf32> to vector<2x96xf32>
    %141 = arith.truncf %139 : vector<2x32xf32> to vector<2x32xbf16>
    %cst_22 = arith.constant dense<0.000000e+00> : vector<2x96xf32>
    %142 = tpu.matmul %141, %12, %cst_22 {dimension_numbers = #tpu.dot_dimension_numbers<[1], [0], [0], [1], [0, 0, 1, 1], [], []>} : vector<2x32xbf16>, vector<32x96xbf16>, vector<2x96xf32> -> vector<2x96xf32>
    %143 = vector.extract_strided_slice %140 {offsets = [0, 0], sizes = [2, 64], strides = [1, 1]} : vector<2x96xf32> to vector<2x64xf32>
    %144 = vector.extract_strided_slice %142 {offsets = [0, 0], sizes = [2, 64], strides = [1, 1]} : vector<2x96xf32> to vector<2x64xf32>
    %145 = arith.addf %143, %144 : vector<2x64xf32>
    %146 = arith.negf %145 : vector<2x64xf32>
    %147 = math.exp %146 : vector<2x64xf32>
    %cst_23 = arith.constant 1.000000e+00 : f32
    %148 = vector.broadcast %cst_23 : f32 to vector<2x64xf32>
    %149 = arith.addf %148, %147 : vector<2x64xf32>
    %150 = arith.divf %148, %149 : vector<2x64xf32>
    %151 = vector.extract_strided_slice %150 {offsets = [0, 0], sizes = [2, 32], strides = [1, 1]} : vector<2x64xf32> to vector<2x32xf32>
    %152 = vector.extract_strided_slice %150 {offsets = [0, 32], sizes = [2, 32], strides = [1, 1]} : vector<2x64xf32> to vector<2x32xf32>
    %153 = vector.extract_strided_slice %140 {offsets = [0, 64], sizes = [2, 32], strides = [1, 1]} : vector<2x96xf32> to vector<2x32xf32>
    %154 = vector.extract_strided_slice %142 {offsets = [0, 64], sizes = [2, 32], strides = [1, 1]} : vector<2x96xf32> to vector<2x32xf32>
    %155 = vector.broadcast %13 : vector<1x32xf32> to vector<2x32xf32>
    %156 = arith.addf %154, %155 : vector<2x32xf32>
    %157 = arith.mulf %151, %156 : vector<2x32xf32>
    %158 = arith.addf %153, %157 : vector<2x32xf32>
    %159 = math.tanh %158 : vector<2x32xf32>
    %cst_24 = arith.constant 1.000000e+00 : f32
    %160 = vector.broadcast %cst_24 : f32 to vector<2x32xf32>
    %161 = arith.subf %160, %152 : vector<2x32xf32>
    %162 = arith.mulf %161, %159 : vector<2x32xf32>
    %163 = arith.mulf %152, %139 : vector<2x32xf32>
    %164 = arith.addf %162, %163 : vector<2x32xf32>
    %165 = vector.extract_strided_slice %10 {offsets = [12, 0], sizes = [2, 96], strides = [1, 1]} : vector<16x96xf32> to vector<2x96xf32>
    %166 = arith.truncf %164 : vector<2x32xf32> to vector<2x32xbf16>
    %cst_25 = arith.constant dense<0.000000e+00> : vector<2x96xf32>
    %167 = tpu.matmul %166, %12, %cst_25 {dimension_numbers = #tpu.dot_dimension_numbers<[1], [0], [0], [1], [0, 0, 1, 1], [], []>} : vector<2x32xbf16>, vector<32x96xbf16>, vector<2x96xf32> -> vector<2x96xf32>
    %168 = vector.extract_strided_slice %165 {offsets = [0, 0], sizes = [2, 64], strides = [1, 1]} : vector<2x96xf32> to vector<2x64xf32>
    %169 = vector.extract_strided_slice %167 {offsets = [0, 0], sizes = [2, 64], strides = [1, 1]} : vector<2x96xf32> to vector<2x64xf32>
    %170 = arith.addf %168, %169 : vector<2x64xf32>
    %171 = arith.negf %170 : vector<2x64xf32>
    %172 = math.exp %171 : vector<2x64xf32>
    %cst_26 = arith.constant 1.000000e+00 : f32
    %173 = vector.broadcast %cst_26 : f32 to vector<2x64xf32>
    %174 = arith.addf %173, %172 : vector<2x64xf32>
    %175 = arith.divf %173, %174 : vector<2x64xf32>
    %176 = vector.extract_strided_slice %175 {offsets = [0, 0], sizes = [2, 32], strides = [1, 1]} : vector<2x64xf32> to vector<2x32xf32>
    %177 = vector.extract_strided_slice %175 {offsets = [0, 32], sizes = [2, 32], strides = [1, 1]} : vector<2x64xf32> to vector<2x32xf32>
    %178 = vector.extract_strided_slice %165 {offsets = [0, 64], sizes = [2, 32], strides = [1, 1]} : vector<2x96xf32> to vector<2x32xf32>
    %179 = vector.extract_strided_slice %167 {offsets = [0, 64], sizes = [2, 32], strides = [1, 1]} : vector<2x96xf32> to vector<2x32xf32>
    %180 = vector.broadcast %13 : vector<1x32xf32> to vector<2x32xf32>
    %181 = arith.addf %179, %180 : vector<2x32xf32>
    %182 = arith.mulf %176, %181 : vector<2x32xf32>
    %183 = arith.addf %178, %182 : vector<2x32xf32>
    %184 = math.tanh %183 : vector<2x32xf32>
    %cst_27 = arith.constant 1.000000e+00 : f32
    %185 = vector.broadcast %cst_27 : f32 to vector<2x32xf32>
    %186 = arith.subf %185, %177 : vector<2x32xf32>
    %187 = arith.mulf %186, %184 : vector<2x32xf32>
    %188 = arith.mulf %177, %164 : vector<2x32xf32>
    %189 = arith.addf %187, %188 : vector<2x32xf32>
    %190 = vector.extract_strided_slice %10 {offsets = [14, 0], sizes = [2, 96], strides = [1, 1]} : vector<16x96xf32> to vector<2x96xf32>
    %191 = arith.truncf %189 : vector<2x32xf32> to vector<2x32xbf16>
    %cst_28 = arith.constant dense<0.000000e+00> : vector<2x96xf32>
    %192 = tpu.matmul %191, %12, %cst_28 {dimension_numbers = #tpu.dot_dimension_numbers<[1], [0], [0], [1], [0, 0, 1, 1], [], []>} : vector<2x32xbf16>, vector<32x96xbf16>, vector<2x96xf32> -> vector<2x96xf32>
    %193 = vector.extract_strided_slice %190 {offsets = [0, 0], sizes = [2, 64], strides = [1, 1]} : vector<2x96xf32> to vector<2x64xf32>
    %194 = vector.extract_strided_slice %192 {offsets = [0, 0], sizes = [2, 64], strides = [1, 1]} : vector<2x96xf32> to vector<2x64xf32>
    %195 = arith.addf %193, %194 : vector<2x64xf32>
    %196 = arith.negf %195 : vector<2x64xf32>
    %197 = math.exp %196 : vector<2x64xf32>
    %cst_29 = arith.constant 1.000000e+00 : f32
    %198 = vector.broadcast %cst_29 : f32 to vector<2x64xf32>
    %199 = arith.addf %198, %197 : vector<2x64xf32>
    %200 = arith.divf %198, %199 : vector<2x64xf32>
    %201 = vector.extract_strided_slice %200 {offsets = [0, 0], sizes = [2, 32], strides = [1, 1]} : vector<2x64xf32> to vector<2x32xf32>
    %202 = vector.extract_strided_slice %200 {offsets = [0, 32], sizes = [2, 32], strides = [1, 1]} : vector<2x64xf32> to vector<2x32xf32>
    %203 = vector.extract_strided_slice %190 {offsets = [0, 64], sizes = [2, 32], strides = [1, 1]} : vector<2x96xf32> to vector<2x32xf32>
    %204 = vector.extract_strided_slice %192 {offsets = [0, 64], sizes = [2, 32], strides = [1, 1]} : vector<2x96xf32> to vector<2x32xf32>
    %205 = vector.broadcast %13 : vector<1x32xf32> to vector<2x32xf32>
    %206 = arith.addf %204, %205 : vector<2x32xf32>
    %207 = arith.mulf %201, %206 : vector<2x32xf32>
    %208 = arith.addf %203, %207 : vector<2x32xf32>
    %209 = math.tanh %208 : vector<2x32xf32>
    %cst_30 = arith.constant 1.000000e+00 : f32
    %210 = vector.broadcast %cst_30 : f32 to vector<2x32xf32>
    %211 = arith.subf %210, %202 : vector<2x32xf32>
    %212 = arith.mulf %211, %209 : vector<2x32xf32>
    %213 = arith.mulf %202, %189 : vector<2x32xf32>
    %214 = arith.addf %212, %213 : vector<2x32xf32>
    %c0_31 = arith.constant 0 : index
    %c0_32 = arith.constant 0 : index
    %c0_33 = arith.constant 0 : index
    %215 = vector.load %arg1[%c0_31, %c0_32, %c0_33] : memref<2x8x32xf32, #tpu.memory_space<vmem>>, vector<2x8x32xf32>
    %216 = vector.shape_cast %215 : vector<2x8x32xf32> to vector<16x32xf32>
    %c104 = arith.constant 104 : index
    %c0_34 = arith.constant 0 : index
    %217 = vector.load %arg2[%c104, %c0_34] : memref<344x128xf32, #tpu.memory_space<vmem>>, vector<32x32xf32>
    %cst_35 = arith.constant dense<0.000000e+00> : vector<16x32xf32>
    %218 = tpu.matmul %216, %217, %cst_35 {dimension_numbers = #tpu.dot_dimension_numbers<[1], [0], [0], [1], [0, 0, 1, 1], [], []>} : vector<16x32xf32>, vector<32x32xf32>, vector<16x32xf32> -> vector<16x32xf32>
    %c136 = arith.constant 136 : index
    %c0_36 = arith.constant 0 : index
    %219 = vector.load %arg2[%c136, %c0_36] : memref<344x128xf32, #tpu.memory_space<vmem>>, vector<1x32xf32>
    %220 = vector.broadcast %219 : vector<1x32xf32> to vector<16x32xf32>
    %221 = arith.addf %218, %220 : vector<16x32xf32>
    %cst_37 = arith.constant 0.000000e+00 : f32
    %222 = vector.broadcast %cst_37 : f32 to vector<16x32xf32>
    %223 = arith.maximumf %221, %222 : vector<16x32xf32>
    %c144 = arith.constant 144 : index
    %c0_38 = arith.constant 0 : index
    %224 = vector.load %arg2[%c144, %c0_38] : memref<344x128xf32, #tpu.memory_space<vmem>>, vector<32x64xf32>
    %cst_39 = arith.constant dense<0.000000e+00> : vector<2x64xf32>
    %225 = tpu.matmul %214, %224, %cst_39 {dimension_numbers = #tpu.dot_dimension_numbers<[1], [0], [0], [1], [0, 0, 1, 1], [], []>} : vector<2x32xf32>, vector<32x64xf32>, vector<2x64xf32> -> vector<2x64xf32>
    %c176 = arith.constant 176 : index
    %c0_40 = arith.constant 0 : index
    %226 = vector.load %arg2[%c176, %c0_40] : memref<344x128xf32, #tpu.memory_space<vmem>>, vector<1x64xf32>
    %227 = vector.broadcast %226 : vector<1x64xf32> to vector<2x64xf32>
    %228 = arith.addf %225, %227 : vector<2x64xf32>
    %cst_41 = arith.constant 0.000000e+00 : f32
    %229 = vector.broadcast %cst_41 : f32 to vector<2x64xf32>
    %230 = arith.maximumf %228, %229 : vector<2x64xf32>
    %231 = vector.extract_strided_slice %230 {offsets = [0, 0], sizes = [2, 32], strides = [1, 1]} : vector<2x64xf32> to vector<2x32xf32>
    %232 = vector.extract_strided_slice %230 {offsets = [0, 32], sizes = [2, 32], strides = [1, 1]} : vector<2x64xf32> to vector<2x32xf32>
    %c184 = arith.constant 184 : index
    %c0_42 = arith.constant 0 : index
    %233 = vector.load %arg2[%c184, %c0_42] : memref<344x128xf32, #tpu.memory_space<vmem>>, vector<1x32xf32>
    %234 = vector.extract_strided_slice %223 {offsets = [0, 0], sizes = [8, 32], strides = [1, 1]} : vector<16x32xf32> to vector<8x32xf32>
    %235 = vector.extract_strided_slice %231 {offsets = [0, 0], sizes = [1, 32], strides = [1, 1]} : vector<2x32xf32> to vector<1x32xf32>
    %236 = vector.broadcast %235 : vector<1x32xf32> to vector<8x32xf32>
    %237 = arith.mulf %234, %236 : vector<8x32xf32>
    %238 = vector.broadcast %233 : vector<1x32xf32> to vector<8x32xf32>
    %239 = arith.mulf %237, %238 : vector<8x32xf32>
    %cst_43 = arith.constant dense<0.000000e+00> : vector<8xf32>
    %240 = vector.multi_reduction <add>, %239, %cst_43 [1] : vector<8x32xf32> to vector<8xf32>
    %241 = vector.shape_cast %240 : vector<8xf32> to vector<8x1xf32>
    %cst_44 = arith.constant dense<0xFF800000> : vector<1xf32>
    %242 = vector.multi_reduction <maximumf>, %241, %cst_44 [0] : vector<8x1xf32> to vector<1xf32>
    %243 = vector.shape_cast %242 : vector<1xf32> to vector<1x1xf32>
    %244 = vector.broadcast %243 : vector<1x1xf32> to vector<8x1xf32>
    %245 = arith.subf %241, %244 : vector<8x1xf32>
    %246 = math.exp %245 : vector<8x1xf32>
    %cst_45 = arith.constant dense<0.000000e+00> : vector<1xf32>
    %247 = vector.multi_reduction <add>, %246, %cst_45 [0] : vector<8x1xf32> to vector<1xf32>
    %248 = vector.shape_cast %247 : vector<1xf32> to vector<1x1xf32>
    %249 = vector.broadcast %248 : vector<1x1xf32> to vector<8x1xf32>
    %250 = arith.divf %246, %249 : vector<8x1xf32>
    %251 = vector.extract_strided_slice %216 {offsets = [0, 0], sizes = [8, 32], strides = [1, 1]} : vector<16x32xf32> to vector<8x32xf32>
    %252 = vector.broadcast %250 : vector<8x1xf32> to vector<8x32xf32>
    %253 = arith.mulf %252, %251 : vector<8x32xf32>
    %cst_46 = arith.constant dense<0.000000e+00> : vector<32xf32>
    %254 = vector.multi_reduction <add>, %253, %cst_46 [0] : vector<8x32xf32> to vector<32xf32>
    %255 = vector.shape_cast %254 : vector<32xf32> to vector<1x32xf32>
    %256 = vector.extract_strided_slice %223 {offsets = [8, 0], sizes = [8, 32], strides = [1, 1]} : vector<16x32xf32> to vector<8x32xf32>
    %257 = vector.extract_strided_slice %231 {offsets = [1, 0], sizes = [1, 32], strides = [1, 1]} : vector<2x32xf32> to vector<1x32xf32>
    %258 = vector.broadcast %257 : vector<1x32xf32> to vector<8x32xf32>
    %259 = arith.mulf %256, %258 : vector<8x32xf32>
    %260 = vector.broadcast %233 : vector<1x32xf32> to vector<8x32xf32>
    %261 = arith.mulf %259, %260 : vector<8x32xf32>
    %cst_47 = arith.constant dense<0.000000e+00> : vector<8xf32>
    %262 = vector.multi_reduction <add>, %261, %cst_47 [1] : vector<8x32xf32> to vector<8xf32>
    %263 = vector.shape_cast %262 : vector<8xf32> to vector<8x1xf32>
    %cst_48 = arith.constant dense<0xFF800000> : vector<1xf32>
    %264 = vector.multi_reduction <maximumf>, %263, %cst_48 [0] : vector<8x1xf32> to vector<1xf32>
    %265 = vector.shape_cast %264 : vector<1xf32> to vector<1x1xf32>
    %266 = vector.broadcast %265 : vector<1x1xf32> to vector<8x1xf32>
    %267 = arith.subf %263, %266 : vector<8x1xf32>
    %268 = math.exp %267 : vector<8x1xf32>
    %cst_49 = arith.constant dense<0.000000e+00> : vector<1xf32>
    %269 = vector.multi_reduction <add>, %268, %cst_49 [0] : vector<8x1xf32> to vector<1xf32>
    %270 = vector.shape_cast %269 : vector<1xf32> to vector<1x1xf32>
    %271 = vector.broadcast %270 : vector<1x1xf32> to vector<8x1xf32>
    %272 = arith.divf %268, %271 : vector<8x1xf32>
    %273 = vector.extract_strided_slice %216 {offsets = [8, 0], sizes = [8, 32], strides = [1, 1]} : vector<16x32xf32> to vector<8x32xf32>
    %274 = vector.broadcast %272 : vector<8x1xf32> to vector<8x32xf32>
    %275 = arith.mulf %274, %273 : vector<8x32xf32>
    %cst_50 = arith.constant dense<0.000000e+00> : vector<32xf32>
    %276 = vector.multi_reduction <add>, %275, %cst_50 [0] : vector<8x32xf32> to vector<32xf32>
    %277 = vector.shape_cast %276 : vector<32xf32> to vector<1x32xf32>
    %278 = tpu.concatenate %255, %277 in 0 : vector<1x32xf32>, vector<1x32xf32> -> vector<2x32xf32>
    %c192 = arith.constant 192 : index
    %c0_51 = arith.constant 0 : index
    %279 = vector.load %arg2[%c192, %c0_51] : memref<344x128xf32, #tpu.memory_space<vmem>>, vector<32x32xf32>
    %cst_52 = arith.constant dense<0.000000e+00> : vector<2x32xf32>
    %280 = tpu.matmul %278, %279, %cst_52 {dimension_numbers = #tpu.dot_dimension_numbers<[1], [0], [0], [1], [0, 0, 1, 1], [], []>} : vector<2x32xf32>, vector<32x32xf32>, vector<2x32xf32> -> vector<2x32xf32>
    %c224 = arith.constant 224 : index
    %c0_53 = arith.constant 0 : index
    %281 = vector.load %arg2[%c224, %c0_53] : memref<344x128xf32, #tpu.memory_space<vmem>>, vector<1x32xf32>
    %282 = vector.broadcast %281 : vector<1x32xf32> to vector<2x32xf32>
    %283 = arith.addf %280, %282 : vector<2x32xf32>
    %cst_54 = arith.constant 0.000000e+00 : f32
    %284 = vector.broadcast %cst_54 : f32 to vector<2x32xf32>
    %285 = arith.maximumf %283, %284 : vector<2x32xf32>
    %286 = arith.mulf %232, %285 : vector<2x32xf32>
    %c232 = arith.constant 232 : index
    %c0_55 = arith.constant 0 : index
    %287 = vector.load %arg2[%c232, %c0_55] : memref<344x128xf32, #tpu.memory_space<vmem>>, vector<32x64xf32>
    %cst_56 = arith.constant dense<0.000000e+00> : vector<2x64xf32>
    %288 = tpu.matmul %286, %287, %cst_56 {dimension_numbers = #tpu.dot_dimension_numbers<[1], [0], [0], [1], [0, 0, 1, 1], [], []>} : vector<2x32xf32>, vector<32x64xf32>, vector<2x64xf32> -> vector<2x64xf32>
    %c264 = arith.constant 264 : index
    %c0_57 = arith.constant 0 : index
    %289 = vector.load %arg2[%c264, %c0_57] : memref<344x128xf32, #tpu.memory_space<vmem>>, vector<1x64xf32>
    %290 = vector.broadcast %289 : vector<1x64xf32> to vector<2x64xf32>
    %291 = arith.addf %288, %290 : vector<2x64xf32>
    %cst_58 = arith.constant 0.000000e+00 : f32
    %292 = vector.broadcast %cst_58 : f32 to vector<2x64xf32>
    %293 = arith.maximumf %291, %292 : vector<2x64xf32>
    %c272 = arith.constant 272 : index
    %c0_59 = arith.constant 0 : index
    %294 = vector.load %arg2[%c272, %c0_59] : memref<344x128xf32, #tpu.memory_space<vmem>>, vector<64x16xf32>
    %cst_60 = arith.constant dense<0.000000e+00> : vector<2x16xf32>
    %295 = tpu.matmul %293, %294, %cst_60 {dimension_numbers = #tpu.dot_dimension_numbers<[1], [0], [0], [1], [0, 0, 1, 1], [], []>} : vector<2x64xf32>, vector<64x16xf32>, vector<2x16xf32> -> vector<2x16xf32>
    %c336 = arith.constant 336 : index
    %c0_61 = arith.constant 0 : index
    %296 = vector.load %arg2[%c336, %c0_61] : memref<344x128xf32, #tpu.memory_space<vmem>>, vector<1x16xf32>
    %297 = vector.broadcast %296 : vector<1x16xf32> to vector<2x16xf32>
    %298 = arith.addf %295, %297 : vector<2x16xf32>
    %299 = tpu.concatenate %286, %298 in 1 : vector<2x32xf32>, vector<2x16xf32> -> vector<2x48xf32>
    %c0_62 = arith.constant 0 : index
    %c0_63 = arith.constant 0 : index
    %300 = vector.load %arg3[%c0_62, %c0_63] : memref<2x48xf32, #tpu.memory_space<vmem>>, vector<2x48xf32>
    tpu.vector_store %arg3[%c0_62, %c0_63], %299 {strides = array<i32>} : memref<2x48xf32, #tpu.memory_space<vmem>>, vector<2x48xf32>,
    return
  }
}

</mosaic_0001>

<llo_original>
// kernel: base_model_forward.1
$region0: #{base_model_forward.1}
  #allocation0 [shape = 'u32[]', space=smem, size = 0x4, offset = 0x4, fixed_abs, tag = 'smem constant byte address 0x4 - core index']
  #allocation1 [shape = 'u32[144,128]{1,0:T(1,128)}', space=vmem, size = 0x12000, scoped, tag = 'internal scratch']
  %s0 = inlined_call_operand.vmem [shape: s32[16,1], index: 0, kind: input, shape index: {}]
  %s1 = inlined_call_operand.vmem [shape: f32[2,8,32], index: 1, kind: input, shape index: {}]
  %s2 = inlined_call_operand.hbm [shape: f32[344,128], index: 2, kind: input, shape index: {}]
  %s3 = inlined_call_operand.vmem [shape: f32[2,48], index: 3, kind: output, shape index: {}]
  %s4 = sld [smem:[#allocation0]]
  $region26: #{base_model_forward.1} parent=0
    _
  %s6 = ssub.s32 1, %s4
  %s7 = scalar_select 0, %s6, %s4
  $region1: #{base_model_forward.1} parent=0
    #allocation2 [shape = 'u8[176128]{0}', space=vmem, size = 0x2b000, scoped, tag = 'input window, operand 2, single buffered']
    #allocation3 [shape = 's32[1]{0}', space=sflag, size = 0x4, scoped, tag = 'scoped memory for base_model_forward.1']
    %8 = vsyncpa [#allocation3], 0
    // Predicated region
    $region2: #{base_model_forward.1} parent=1 // pred_check
      _
    $region3: #{base_model_forward.1} parent=1 // pred_check_branch
      %10 = sbr.rel (0) target = $region5
    $region4: #{base_model_forward.1} parent=1 // pred_region
      _
    $region5: #{base_model_forward.1} parent=1 // pred_fallthru
      _
    // Predicated region
    $region6: #{base_model_forward.1} parent=1 // pred_check
      _
    $region7: #{base_model_forward.1} parent=1 // pred_check_branch
      %12 = sbr.rel (0) target = $region9
    $region8: #{base_model_forward.1} parent=1 // pred_region
      _
    $region9: #{base_model_forward.1} parent=1 // pred_fallthru
      _
    // Predicated region
    $region10: #{base_model_forward.1} parent=1 // pred_check
      _
    $region11: #{base_model_forward.1} parent=1 // pred_check_branch
      %14 = sbr.rel (0) target = $region13
    $region12: #{base_model_forward.1} parent=1 // pred_region
      %s16 = ssub.s32 5504, 5504
      %17 = vsyncadd [#allocation3], %s16
      %s18 = sshll.u32 [#allocation2], 4
      %s19 = int_to_ptr.vmem [resolvable:$true] %s18
      %24 = dma.hbm_to_vmem [thread:$0]  %s2, 5504, %s19, [#allocation3], 128, 128, 8
    $region13: #{base_model_forward.1} parent=1 // pred_fallthru
      _
    // Predicated region
    $region14: #{base_model_forward.1} parent=1 // pred_check
      _
    $region15: #{base_model_forward.1} parent=1 // pred_check_branch
      %26 = sbr.rel (0) target = $region17
    $region16: #{base_model_forward.1} parent=1 // pred_region
      %27 = dma.done [#allocation3], 5504
    $region17: #{base_model_forward.1} parent=1 // pred_fallthru
      _
    %v29 = vld [vmem:[%s0] sm:$0xff]
    %v30 = vld [vmem:[%s0 + $0x8] sm:$0xff]
    %v31 = vlaneseq
    %v32 = vand.u32 %v31, 127
    %33 = vset.pattern.permute.xlu0 0
    %34 = vperm.xlu0 %33, %v29
    %v35 = vpop.permute.xlu0 %34
    %36 = vset.pattern.permute.xlu0 0
    %37 = vperm.xlu0 %36, %v30
    %v38 = vpop.permute.xlu0 %37
    %vm39 = vcmp.eq.s32.totalorder %v32, %v35
    %vm40 = vcmp.eq.s32.totalorder %v32, %v38
    %v41 = vsel %vm39, 1, 0
    %v42 = vsel %vm40, 1, 0
    %v43 = vcvt.s32.f32 %v41
    %v44 = vcvt.s32.f32 %v42
    %v45 = vld [vmem:[#allocation2] sm:$0xff]
    %v46 = vld [vmem:[#allocation2 + $0x8] sm:$0xff]
    %v47 = vld [vmem:[#allocation2 + $0x10] sm:$0xff]
    %v48 = vld [vmem:[#allocation2 + $0x18] sm:$0xff]
    %v49 = vld [vmem:[#allocation2 + $0x20] sm:$0xff]
    %v50 = vld [vmem:[#allocation2 + $0x28] sm:$0xff]
    %v51 = vld [vmem:[#allocation2 + $0x30] sm:$0x3]
    %v52 = vld [vmem:[#allocation2 + $0x38] sm:$0x1]
    %v53 = vlaneseq
    %v54 = vshrl.u32 %v53, 7
    %v55 = vsub.s32 0, %v54
    %v56 = vrot.slane %v52, %v55
    %vm57 = vcmask 408576
    %v59 = vsel %vm57, %v43, 0
    %v62 = vsel %vm57, %v44, 0
    %vm64 = vcmask 1041408
    %v66 = vsel %vm64, %v51, 0
    %68 = vmatprep.subr.mxu0 0.0
    %69 = vmatpush1.msra.mxu0 %v45
    %70 = vmatprep.subr.mxu0 0.0
    %71 = vmatpush1.msra.mxu0 %v46
    %72 = vmatprep.subr.mxu0 0.0
    %73 = vmatpush1.msra.mxu0 %v47
    %74 = vmatprep.subr.mxu0 0.0
    %75 = vmatpush1.msra.mxu0 %v48
    %76 = vmatprep.subr.mxu0 0.0
    %77 = vmatpush1.msra.mxu0 %v49
    %78 = vmatprep.subr.mxu0 0.0
    %79 = vmatpush1.msra.mxu0 %v50
    %80 = vmatprep.subr.mxu0 0.0
    %81 = vmatpush1.msra.mxu0 %v66
    %82 = vmatprep.subr.mxu0 0.0
    %83 = vmatpush1.msra.mxu0 0.0
    %84 = vmatprep.subr.mxu0 0.0
    %85 = vmatpush1.msra.mxu0 0.0
    %86 = vmatprep.subr.mxu0 0.0
    %87 = vmatpush1.msra.mxu0 0.0
    %88 = vmatprep.subr.mxu0 0.0
    %89 = vmatpush1.msra.mxu0 0.0
    %90 = vmatprep.subr.mxu0 0.0
    %91 = vmatpush1.msra.mxu0 0.0
    %92 = vmatprep.subr.mxu0 0.0
    %93 = vmatpush1.msra.mxu0 0.0
    %94 = vmatprep.subr.mxu0 0.0
    %95 = vmatpush1.msra.mxu0 0.0
    %96 = vmatprep.subr.mxu0 0.0
    %97 = vmatpush1.msra.mxu0 0.0
    %98 = vmatprep.subr.mxu0 0.0
    %99 = vmatpush1.msra.mxu0 0.0
    %100 = vmatprep.subr.mxu0 0.0
    %101 = vmatpush1.msra.mxu0 0.0
    %102 = vmatprep.subr.mxu0 0.0
    %103 = vmatpush1.msra.mxu0 0.0
    %104 = vmatprep.subr.mxu0 0.0
    %105 = vmatpush1.msra.mxu0 0.0
    %106 = vmatprep.subr.mxu0 0.0
    %107 = vmatpush1.msra.mxu0 0.0
    %108 = vmatprep.subr.mxu0 0.0
    %109 = vmatpush1.msra.mxu0 0.0
    %110 = vmatprep.subr.mxu0 0.0
    %111 = vmatpush1.msra.mxu0 0.0
    %112 = vmatprep.subr.mxu0 0.0
    %113 = vmatpush1.msra.mxu0 0.0
    %114 = vmatprep.subr.mxu0 0.0
    %115 = vmatpush1.msra.mxu0 0.0
    %116 = vmatprep.subr.mxu0 0.0
    %117 = vmatpush1.msra.mxu0 0.0
    %118 = vmatprep.subr.mxu0 0.0
    %119 = vmatpush1.msra.mxu0 0.0
    %120 = vmatprep.subr.mxu0 0.0
    %121 = vmatpush1.msra.mxu0 0.0
    %122 = vmatprep.subr.mxu0 0.0
    %123 = vmatpush1.msra.mxu0 0.0
    %124 = vmatprep.subr.mxu0 0.0
    %125 = vmatpush1.msra.mxu0 0.0
    %126 = vmatprep.subr.mxu0 0.0
    %127 = vmatpush1.msra.mxu0 0.0
    %128 = vmatprep.subr.mxu0 0.0
    %129 = vmatpush1.msra.mxu0 0.0
    %130 = vmatprep.subr.mxu0 0.0
    %131 = vmatpush1.msra.mxu0 0.0
    %132 = vmatprep.mubr.f32.mxu0 0.0
    %133 = vmatmul.mubr.f32.gmra.mrb[0].mxu0 %v59
    %v134 = vpop.f32.mrb[0].mxu0
    %v135 = vadd.f32 %v56, %v134
    %v136 = vpop.f32.mrb[0].mxu0
    %137 = vmatprep.mubr.f32.mxu0 0.0
    %138 = vmatmul.mubr.f32.gmra.mrb[0].mxu0 %v62
    %v139 = vpop.f32.mrb[0].mxu0
    %v140 = vadd.f32 %v56, %v139
    %v141 = vpop.f32.mrb[0].mxu0
    %142 = vdwg.mxu0
    %v143 = vld [vmem:[#allocation2 + $0x48] sm:$0xff]
    %v144 = vld [vmem:[#allocation2 + $0x50] sm:$0xff]
    %v145 = vld [vmem:[#allocation2 + $0x58] sm:$0xff]
    %v146 = vld [vmem:[#allocation2 + $0x60] sm:$0xff]
    %v147 = vpack.c.bf16 %v144, %v143
    %v148 = vpack.c.bf16 %v146, %v145
    %v149 = vld [vmem:[#allocation2 + $0x40] sm:$0x1]
    %vm150 = vcmask 261120
    %v152 = vsel %vm150, 0, 0
    %154 = vmatprep.subr.bf16.mxu0 0
    %155 = vmatpush1.bf16.msra.mxu0 %v147
    %156 = vmatprep.subr.bf16.mxu0 0
    %157 = vmatpush1.bf16.msra.mxu0 %v148
    %158 = vmatprep.subr.bf16.mxu0 0
    %159 = vmatpush1.bf16.msra.mxu0 0
    %160 = vmatprep.subr.bf16.mxu0 0
    %161 = vmatpush1.bf16.msra.mxu0 0
    %162 = vmatprep.subr.bf16.mxu0 0
    %163 = vmatpush1.bf16.msra.mxu0 0
    %164 = vmatprep.subr.bf16.mxu0 0
    %165 = vmatpush1.bf16.msra.mxu0 0
    %166 = vmatprep.subr.bf16.mxu0 0
    %167 = vmatpush1.bf16.msra.mxu0 0
    %168 = vmatprep.subr.bf16.mxu0 0
    %169 = vmatpush1.bf16.msra.mxu0 0
    %170 = vmatprep.subr.bf16.mxu0 0
    %171 = vmatpush1.bf16.msra.mxu0 0
    %172 = vmatprep.subr.bf16.mxu0 0
    %173 = vmatpush1.bf16.msra.mxu0 0
    %174 = vmatprep.subr.bf16.mxu0 0
    %175 = vmatpush1.bf16.msra.mxu0 0
    %176 = vmatprep.subr.bf16.mxu0 0
    %177 = vmatpush1.bf16.msra.mxu0 0
    %178 = vmatprep.subr.bf16.mxu0 0
    %179 = vmatpush1.bf16.msra.mxu0 0
    %180 = vmatprep.subr.bf16.mxu0 0
    %181 = vmatpush1.bf16.msra.mxu0 0
    %182 = vmatprep.subr.bf16.mxu0 0
    %183 = vmatpush1.bf16.msra.mxu0 0
    %184 = vmatprep.subr.bf16.mxu0 0
    %185 = vmatpush1.bf16.msra.mxu0 0
    %186 = vmatprep.mubr.bf16.mxu0 0
    %187 = vmatmul.mubr.bf16.gmra.mrb[0].mxu0 %v152
    %v188 = vpop.f32.mrb[0].mxu0
    %v189 = vadd.f32 0.0, %v188
    %v190 = vpop.f32.mrb[0].mxu0
    %v191 = vpop.f32.mrb[0].mxu0
    %v192 = vpop.f32.mrb[0].mxu0
    %193 = vdwg.mxu0
    %v194 = vadd.f32 %v135, %v189
    %v195 = vxor.u32 %v194, 2147483648
    %v196 = vmul.f32 %v195, 1.442695
    %v197 = vpow.pop %v196
    %v198 = vadd.f32 %v197, 1.0
    %v199 = vrcp.pop %v198
    %v200 = vmul.f32 1.0, %v199
    %v201 = vlaneseq
    %v202 = vshrl.u32 %v201, 7
    %v203 = vsub.s32 0, %v202
    %v204 = vrot.slane %v149, %v203
    %206 = vrot.lane.b32.xlu0 %v204, 64
    %v207 = vpop.permute.xlu0 %206
    %v209 = vadd.f32 %v189, %v207
    %211 = vrot.lane.b32.xlu0 %v209, 64
    %v212 = vpop.permute.xlu0 %211
    %v214 = vmul.f32 %v200, %v212
    %216 = vrot.lane.b32.xlu0 %v214, 64
    %v217 = vpop.permute.xlu0 %216
    %v219 = vadd.f32 %v135, %v217
    %v220 = vtanh.pop %v219
    %v221 = vsub.f32 1.0, %v200
    %223 = vrot.lane.b32.xlu0 %v220, 96
    %v224 = vpop.permute.xlu0 %223
    %v226 = vmul.f32 %v221, %v224
    %v227 = vmul.f32 %v200, 0.0
    %v228 = vadd.f32 %v226, %v227
    %v229 = vpack.c.bf16 %v228, %v228
    %231 = vrot.lane.b32.xlu0 %v229, 96
    %v232 = vpop.permute.xlu0 %231
    %v234 = vsel %vm150, %v232, 0
    %236 = vmatprep.subr.bf16.mxu0 0
    %237 = vmatpush1.bf16.msra.mxu0 %v147
    %238 = vmatprep.subr.bf16.mxu0 0
    %239 = vmatpush1.bf16.msra.mxu0 %v148
    %240 = vmatprep.subr.bf16.mxu0 0
    %241 = vmatpush1.bf16.msra.mxu0 0
    %242 = vmatprep.subr.bf16.mxu0 0
    %243 = vmatpush1.bf16.msra.mxu0 0
    %244 = vmatprep.subr.bf16.mxu0 0
    %245 = vmatpush1.bf16.msra.mxu0 0
    %246 = vmatprep.subr.bf16.mxu0 0
    %247 = vmatpush1.bf16.msra.mxu0 0
    %248 = vmatprep.subr.bf16.mxu0 0
    %249 = vmatpush1.bf16.msra.mxu0 0
    %250 = vmatprep.subr.bf16.mxu0 0
    %251 = vmatpush1.bf16.msra.mxu0 0
    %252 = vmatprep.subr.bf16.mxu0 0
    %253 = vmatpush1.bf16.msra.mxu0 0
    %254 = vmatprep.subr.bf16.mxu0 0
    %255 = vmatpush1.bf16.msra.mxu0 0
    %256 = vmatprep.subr.bf16.mxu0 0
    %257 = vmatpush1.bf16.msra.mxu0 0
    %258 = vmatprep.subr.bf16.mxu0 0
    %259 = vmatpush1.bf16.msra.mxu0 0
    %260 = vmatprep.subr.bf16.mxu0 0
    %261 = vmatpush1.bf16.msra.mxu0 0
    %262 = vmatprep.subr.bf16.mxu0 0
    %263 = vmatpush1.bf16.msra.mxu0 0
    %264 = vmatprep.subr.bf16.mxu0 0
    %265 = vmatpush1.bf16.msra.mxu0 0
    %266 = vmatprep.subr.bf16.mxu0 0
    %267 = vmatpush1.bf16.msra.mxu0 0
    %268 = vmatprep.mubr.bf16.mxu0 0
    %269 = vmatmul.mubr.bf16.gmra.mrb[0].mxu0 %v234
    %v270 = vpop.f32.mrb[0].mxu0
    %v271 = vadd.f32 0.0, %v270
    %v272 = vpop.f32.mrb[0].mxu0
    %v273 = vpop.f32.mrb[0].mxu0
    %v274 = vpop.f32.mrb[0].mxu0
    %275 = vdwg.mxu0
    %v277 = vrot.slane %v271, 6
    %v279 = vadd.f32 %v135, %v277
    %v280 = vxor.u32 %v279, 2147483648
    %v281 = vmul.f32 %v280, 1.442695
    %v282 = vpow.pop %v281
    %v283 = vadd.f32 %v282, 1.0
    %v284 = vrcp.pop %v283
    %v285 = vmul.f32 1.0, %v284
    %v286 = vadd.f32 %v271, %v207
    %v288 = vrot.slane %v286, 6
    %289 = vrot.lane.b32.xlu0 %v288, 64
    %v290 = vpop.permute.xlu0 %289
    %v292 = vmul.f32 %v285, %v290
    %294 = vrot.lane.b32.xlu0 %v292, 64
    %v295 = vpop.permute.xlu0 %294
    %v297 = vadd.f32 %v135, %v295
    %v298 = vtanh.pop %v297
    %v299 = vsub.f32 1.0, %v285
    %301 = vrot.lane.b32.xlu0 %v298, 96
    %v302 = vpop.permute.xlu0 %301
    %v304 = vmul.f32 %v299, %v302
    %v306 = vrot.slane %v228, 6
    %v308 = vmul.f32 %v285, %v306
    %v309 = vadd.f32 %v304, %v308
    %v310 = vpack.c.bf16 %v309, %v309
    %v312 = vrot.slane %v310, 1
    %313 = vrot.lane.b32.xlu0 %v312, 96
    %v314 = vpop.permute.xlu0 %313
    %v316 = vsel %vm150, %v314, 0
    %318 = vmatprep.subr.bf16.mxu0 0
    %319 = vmatpush1.bf16.msra.mxu0 %v147
    %320 = vmatprep.subr.bf16.mxu0 0
    %321 = vmatpush1.bf16.msra.mxu0 %v148
    %322 = vmatprep.subr.bf16.mxu0 0
    %323 = vmatpush1.bf16.msra.mxu0 0
    %324 = vmatprep.subr.bf16.mxu0 0
    %325 = vmatpush1.bf16.msra.mxu0 0
    %326 = vmatprep.subr.bf16.mxu0 0
    %327 = vmatpush1.bf16.msra.mxu0 0
    %328 = vmatprep.subr.bf16.mxu0 0
    %329 = vmatpush1.bf16.msra.mxu0 0
    %330 = vmatprep.subr.bf16.mxu0 0
    %331 = vmatpush1.bf16.msra.mxu0 0
    %332 = vmatprep.subr.bf16.mxu0 0
    %333 = vmatpush1.bf16.msra.mxu0 0
    %334 = vmatprep.subr.bf16.mxu0 0
    %335 = vmatpush1.bf16.msra.mxu0 0
    %336 = vmatprep.subr.bf16.mxu0 0
    %337 = vmatpush1.bf16.msra.mxu0 0
    %338 = vmatprep.subr.bf16.mxu0 0
    %339 = vmatpush1.bf16.msra.mxu0 0
    %340 = vmatprep.subr.bf16.mxu0 0
    %341 = vmatpush1.bf16.msra.mxu0 0
    %342 = vmatprep.subr.bf16.mxu0 0
    %343 = vmatpush1.bf16.msra.mxu0 0
    %344 = vmatprep.subr.bf16.mxu0 0
    %345 = vmatpush1.bf16.msra.mxu0 0
    %346 = vmatprep.subr.bf16.mxu0 0
    %347 = vmatpush1.bf16.msra.mxu0 0
    %348 = vmatprep.subr.bf16.mxu0 0
    %349 = vmatpush1.bf16.msra.mxu0 0
    %350 = vmatprep.mubr.bf16.mxu0 0
    %351 = vmatmul.mubr.bf16.gmra.mrb[0].mxu0 %v316
    %v352 = vpop.f32.mrb[0].mxu0
    %v353 = vadd.f32 0.0, %v352
    %v354 = vpop.f32.mrb[0].mxu0
    %v355 = vpop.f32.mrb[0].mxu0
    %v356 = vpop.f32.mrb[0].mxu0
    %357 = vdwg.mxu0
    %v359 = vrot.slane %v353, 4
    %v361 = vadd.f32 %v135, %v359
    %v362 = vxor.u32 %v361, 2147483648
    %v363 = vmul.f32 %v362, 1.442695
    %v364 = vpow.pop %v363
    %v365 = vadd.f32 %v364, 1.0
    %v366 = vrcp.pop %v365
    %v367 = vmul.f32 1.0, %v366
    %v368 = vadd.f32 %v353, %v207
    %v370 = vrot.slane %v368, 4
    %371 = vrot.lane.b32.xlu0 %v370, 64
    %v372 = vpop.permute.xlu0 %371
    %v374 = vmul.f32 %v367, %v372
    %376 = vrot.lane.b32.xlu0 %v374, 64
    %v377 = vpop.permute.xlu0 %376
    %v379 = vadd.f32 %v135, %v377
    %v380 = vtanh.pop %v379
    %v381 = vsub.f32 1.0, %v367
    %383 = vrot.lane.b32.xlu0 %v380, 96
    %v384 = vpop.permute.xlu0 %383
    %v386 = vmul.f32 %v381, %v384
    %v388 = vrot.slane %v309, 6
    %v390 = vmul.f32 %v367, %v388
    %v391 = vadd.f32 %v386, %v390
    %v392 = vpack.c.bf16 %v391, %v391
    %v394 = vrot.slane %v392, 2
    %395 = vrot.lane.b32.xlu0 %v394, 96
    %v396 = vpop.permute.xlu0 %395
    %v398 = vsel %vm150, %v396, 0
    %400 = vmatprep.subr.bf16.mxu0 0
    %401 = vmatpush1.bf16.msra.mxu0 %v147
    %402 = vmatprep.subr.bf16.mxu0 0
    %403 = vmatpush1.bf16.msra.mxu0 %v148
    %404 = vmatprep.subr.bf16.mxu0 0
    %405 = vmatpush1.bf16.msra.mxu0 0
    %406 = vmatprep.subr.bf16.mxu0 0
    %407 = vmatpush1.bf16.msra.mxu0 0
    %408 = vmatprep.subr.bf16.mxu0 0
    %409 = vmatpush1.bf16.msra.mxu0 0
    %410 = vmatprep.subr.bf16.mxu0 0
    %411 = vmatpush1.bf16.msra.mxu0 0
    %412 = vmatprep.subr.bf16.mxu0 0
    %413 = vmatpush1.bf16.msra.mxu0 0
    %414 = vmatprep.subr.bf16.mxu0 0
    %415 = vmatpush1.bf16.msra.mxu0 0
    %416 = vmatprep.subr.bf16.mxu0 0
    %417 = vmatpush1.bf16.msra.mxu0 0
    %418 = vmatprep.subr.bf16.mxu0 0
    %419 = vmatpush1.bf16.msra.mxu0 0
    %420 = vmatprep.subr.bf16.mxu0 0
    %421 = vmatpush1.bf16.msra.mxu0 0
    %422 = vmatprep.subr.bf16.mxu0 0
    %423 = vmatpush1.bf16.msra.mxu0 0
    %424 = vmatprep.subr.bf16.mxu0 0
    %425 = vmatpush1.bf16.msra.mxu0 0
    %426 = vmatprep.subr.bf16.mxu0 0
    %427 = vmatpush1.bf16.msra.mxu0 0
    %428 = vmatprep.subr.bf16.mxu0 0
    %429 = vmatpush1.bf16.msra.mxu0 0
    %430 = vmatprep.subr.bf16.mxu0 0
    %431 = vmatpush1.bf16.msra.mxu0 0
    %432 = vmatprep.mubr.bf16.mxu0 0
    %433 = vmatmul.mubr.bf16.gmra.mrb[0].mxu0 %v398
    %v434 = vpop.f32.mrb[0].mxu0
    %v435 = vadd.f32 0.0, %v434
    %v436 = vpop.f32.mrb[0].mxu0
    %v437 = vpop.f32.mrb[0].mxu0
    %v438 = vpop.f32.mrb[0].mxu0
    %439 = vdwg.mxu0
    %v441 = vrot.slane %v435, 2
    %v443 = vadd.f32 %v135, %v441
    %v444 = vxor.u32 %v443, 2147483648
    %v445 = vmul.f32 %v444, 1.442695
    %v446 = vpow.pop %v445
    %v447 = vadd.f32 %v446, 1.0
    %v448 = vrcp.pop %v447
    %v449 = vmul.f32 1.0, %v448
    %v450 = vadd.f32 %v435, %v207
    %v452 = vrot.slane %v450, 2
    %453 = vrot.lane.b32.xlu0 %v452, 64
    %v454 = vpop.permute.xlu0 %453
    %v456 = vmul.f32 %v449, %v454
    %458 = vrot.lane.b32.xlu0 %v456, 64
    %v459 = vpop.permute.xlu0 %458
    %v461 = vadd.f32 %v135, %v459
    %v462 = vtanh.pop %v461
    %v463 = vsub.f32 1.0, %v449
    %465 = vrot.lane.b32.xlu0 %v462, 96
    %v466 = vpop.permute.xlu0 %465
    %v468 = vmul.f32 %v463, %v466
    %v470 = vrot.slane %v391, 6
    %v472 = vmul.f32 %v449, %v470
    %v473 = vadd.f32 %v468, %v472
    %v474 = vpack.c.bf16 %v473, %v473
    %v476 = vrot.slane %v474, 3
    %477 = vrot.lane.b32.xlu0 %v476, 96
    %v478 = vpop.permute.xlu0 %477
    %v480 = vsel %vm150, %v478, 0
    %482 = vmatprep.subr.bf16.mxu0 0
    %483 = vmatpush1.bf16.msra.mxu0 %v147
    %484 = vmatprep.subr.bf16.mxu0 0
    %485 = vmatpush1.bf16.msra.mxu0 %v148
    %486 = vmatprep.subr.bf16.mxu0 0
    %487 = vmatpush1.bf16.msra.mxu0 0
    %488 = vmatprep.subr.bf16.mxu0 0
    %489 = vmatpush1.bf16.msra.mxu0 0
    %490 = vmatprep.subr.bf16.mxu0 0
    %491 = vmatpush1.bf16.msra.mxu0 0
    %492 = vmatprep.subr.bf16.mxu0 0
    %493 = vmatpush1.bf16.msra.mxu0 0
    %494 = vmatprep.subr.bf16.mxu0 0
    %495 = vmatpush1.bf16.msra.mxu0 0
    %496 = vmatprep.subr.bf16.mxu0 0
    %497 = vmatpush1.bf16.msra.mxu0 0
    %498 = vmatprep.subr.bf16.mxu0 0
    %499 = vmatpush1.bf16.msra.mxu0 0
    %500 = vmatprep.subr.bf16.mxu0 0
    %501 = vmatpush1.bf16.msra.mxu0 0
    %502 = vmatprep.subr.bf16.mxu0 0
    %503 = vmatpush1.bf16.msra.mxu0 0
    %504 = vmatprep.subr.bf16.mxu0 0
    %505 = vmatpush1.bf16.msra.mxu0 0
    %506 = vmatprep.subr.bf16.mxu0 0
    %507 = vmatpush1.bf16.msra.mxu0 0
    %508 = vmatprep.subr.bf16.mxu0 0
    %509 = vmatpush1.bf16.msra.mxu0 0
    %510 = vmatprep.subr.bf16.mxu0 0
    %511 = vmatpush1.bf16.msra.mxu0 0
    %512 = vmatprep.subr.bf16.mxu0 0
    %513 = vmatpush1.bf16.msra.mxu0 0
    %514 = vmatprep.mubr.bf16.mxu0 0
    %515 = vmatmul.mubr.bf16.gmra.mrb[0].mxu0 %v480
    %v516 = vpop.f32.mrb[0].mxu0
    %v517 = vadd.f32 0.0, %v516
    %v518 = vpop.f32.mrb[0].mxu0
    %v519 = vpop.f32.mrb[0].mxu0
    %v520 = vpop.f32.mrb[0].mxu0
    %521 = vdwg.mxu0
    %v522 = vadd.f32 %v140, %v517
    %v523 = vxor.u32 %v522, 2147483648
    %v524 = vmul.f32 %v523, 1.442695
    %v525 = vpow.pop %v524
    %v526 = vadd.f32 %v525, 1.0
    %v527 = vrcp.pop %v526
    %v528 = vmul.f32 1.0, %v527
    %v529 = vadd.f32 %v517, %v207
    %531 = vrot.lane.b32.xlu0 %v529, 64
    %v532 = vpop.permute.xlu0 %531
    %v534 = vmul.f32 %v528, %v532
    %536 = vrot.lane.b32.xlu0 %v534, 64
    %v537 = vpop.permute.xlu0 %536
    %v539 = vadd.f32 %v140, %v537
    %v540 = vtanh.pop %v539
    %v541 = vsub.f32 1.0, %v528
    %543 = vrot.lane.b32.xlu0 %v540, 96
    %v544 = vpop.permute.xlu0 %543
    %v546 = vmul.f32 %v541, %v544
    %v548 = vrot.slane %v473, 6
    %v550 = vmul.f32 %v528, %v548
    %v551 = vadd.f32 %v546, %v550
    %v552 = vpack.c.bf16 %v551, %v551
    %554 = vrot.lane.b32.xlu0 %v552, 96
    %v555 = vpop.permute.xlu0 %554
    %v557 = vsel %vm150, %v555, 0
    %559 = vmatprep.subr.bf16.mxu0 0
    %560 = vmatpush1.bf16.msra.mxu0 %v147
    %561 = vmatprep.subr.bf16.mxu0 0
    %562 = vmatpush1.bf16.msra.mxu0 %v148
    %563 = vmatprep.subr.bf16.mxu0 0
    %564 = vmatpush1.bf16.msra.mxu0 0
    %565 = vmatprep.subr.bf16.mxu0 0
    %566 = vmatpush1.bf16.msra.mxu0 0
    %567 = vmatprep.subr.bf16.mxu0 0
    %568 = vmatpush1.bf16.msra.mxu0 0
    %569 = vmatprep.subr.bf16.mxu0 0
    %570 = vmatpush1.bf16.msra.mxu0 0
    %571 = vmatprep.subr.bf16.mxu0 0
    %572 = vmatpush1.bf16.msra.mxu0 0
    %573 = vmatprep.subr.bf16.mxu0 0
    %574 = vmatpush1.bf16.msra.mxu0 0
    %575 = vmatprep.subr.bf16.mxu0 0
    %576 = vmatpush1.bf16.msra.mxu0 0
    %577 = vmatprep.subr.bf16.mxu0 0
    %578 = vmatpush1.bf16.msra.mxu0 0
    %579 = vmatprep.subr.bf16.mxu0 0
    %580 = vmatpush1.bf16.msra.mxu0 0
    %581 = vmatprep.subr.bf16.mxu0 0
    %582 = vmatpush1.bf16.msra.mxu0 0
    %583 = vmatprep.subr.bf16.mxu0 0
    %584 = vmatpush1.bf16.msra.mxu0 0
    %585 = vmatprep.subr.bf16.mxu0 0
    %586 = vmatpush1.bf16.msra.mxu0 0
    %587 = vmatprep.subr.bf16.mxu0 0
    %588 = vmatpush1.bf16.msra.mxu0 0
    %589 = vmatprep.subr.bf16.mxu0 0
    %590 = vmatpush1.bf16.msra.mxu0 0
    %591 = vmatprep.mubr.bf16.mxu0 0
    %592 = vmatmul.mubr.bf16.gmra.mrb[0].mxu0 %v557
    %v593 = vpop.f32.mrb[0].mxu0
    %v594 = vadd.f32 0.0, %v593
    %v595 = vpop.f32.mrb[0].mxu0
    %v596 = vpop.f32.mrb[0].mxu0
    %v597 = vpop.f32.mrb[0].mxu0
    %598 = vdwg.mxu0
    %v600 = vrot.slane %v594, 6
    %v602 = vadd.f32 %v140, %v600
    %v603 = vxor.u32 %v602, 2147483648
    %v604 = vmul.f32 %v603, 1.442695
    %v605 = vpow.pop %v604
    %v606 = vadd.f32 %v605, 1.0
    %v607 = vrcp.pop %v606
    %v608 = vmul.f32 1.0, %v607
    %v609 = vadd.f32 %v594, %v207
    %v611 = vrot.slane %v609, 6
    %612 = vrot.lane.b32.xlu0 %v611, 64
    %v613 = vpop.permute.xlu0 %612
    %v615 = vmul.f32 %v608, %v613
    %617 = vrot.lane.b32.xlu0 %v615, 64
    %v618 = vpop.permute.xlu0 %617
    %v620 = vadd.f32 %v140, %v618
    %v621 = vtanh.pop %v620
    %v622 = vsub.f32 1.0, %v608
    %624 = vrot.lane.b32.xlu0 %v621, 96
    %v625 = vpop.permute.xlu0 %624
    %v627 = vmul.f32 %v622, %v625
    %v629 = vrot.slane %v551, 6
    %v631 = vmul.f32 %v608, %v629
    %v632 = vadd.f32 %v627, %v631
    %v633 = vpack.c.bf16 %v632, %v632
    %v635 = vrot.slane %v633, 1
    %636 = vrot.lane.b32.xlu0 %v635, 96
    %v637 = vpop.permute.xlu0 %636
    %v639 = vsel %vm150, %v637, 0
    %641 = vmatprep.subr.bf16.mxu0 0
    %642 = vmatpush1.bf16.msra.mxu0 %v147
    %643 = vmatprep.subr.bf16.mxu0 0
    %644 = vmatpush1.bf16.msra.mxu0 %v148
    %645 = vmatprep.subr.bf16.mxu0 0
    %646 = vmatpush1.bf16.msra.mxu0 0
    %647 = vmatprep.subr.bf16.mxu0 0
    %648 = vmatpush1.bf16.msra.mxu0 0
    %649 = vmatprep.subr.bf16.mxu0 0
    %650 = vmatpush1.bf16.msra.mxu0 0
    %651 = vmatprep.subr.bf16.mxu0 0
    %652 = vmatpush1.bf16.msra.mxu0 0
    %653 = vmatprep.subr.bf16.mxu0 0
    %654 = vmatpush1.bf16.msra.mxu0 0
    %655 = vmatprep.subr.bf16.mxu0 0
    %656 = vmatpush1.bf16.msra.mxu0 0
    %657 = vmatprep.subr.bf16.mxu0 0
    %658 = vmatpush1.bf16.msra.mxu0 0
    %659 = vmatprep.subr.bf16.mxu0 0
    %660 = vmatpush1.bf16.msra.mxu0 0
    %661 = vmatprep.subr.bf16.mxu0 0
    %662 = vmatpush1.bf16.msra.mxu0 0
    %663 = vmatprep.subr.bf16.mxu0 0
    %664 = vmatpush1.bf16.msra.mxu0 0
    %665 = vmatprep.subr.bf16.mxu0 0
    %666 = vmatpush1.bf16.msra.mxu0 0
    %667 = vmatprep.subr.bf16.mxu0 0
    %668 = vmatpush1.bf16.msra.mxu0 0
    %669 = vmatprep.subr.bf16.mxu0 0
    %670 = vmatpush1.bf16.msra.mxu0 0
    %671 = vmatprep.subr.bf16.mxu0 0
    %672 = vmatpush1.bf16.msra.mxu0 0
    %673 = vmatprep.mubr.bf16.mxu0 0
    %674 = vmatmul.mubr.bf16.gmra.mrb[0].mxu0 %v639
    %v675 = vpop.f32.mrb[0].mxu0
    %v676 = vadd.f32 0.0, %v675
    %v677 = vpop.f32.mrb[0].mxu0
    %v678 = vpop.f32.mrb[0].mxu0
    %v679 = vpop.f32.mrb[0].mxu0
    %680 = vdwg.mxu0
    %v682 = vrot.slane %v676, 4
    %v684 = vadd.f32 %v140, %v682
    %v685 = vxor.u32 %v684, 2147483648
    %v686 = vmul.f32 %v685, 1.442695
    %v687 = vpow.pop %v686
    %v688 = vadd.f32 %v687, 1.0
    %v689 = vrcp.pop %v688
    %v690 = vmul.f32 1.0, %v689
    %v691 = vadd.f32 %v676, %v207
    %v693 = vrot.slane %v691, 4
    %694 = vrot.lane.b32.xlu0 %v693, 64
    %v695 = vpop.permute.xlu0 %694
    %v697 = vmul.f32 %v690, %v695
    %699 = vrot.lane.b32.xlu0 %v697, 64
    %v700 = vpop.permute.xlu0 %699
    %v702 = vadd.f32 %v140, %v700
    %v703 = vtanh.pop %v702
    %v704 = vsub.f32 1.0, %v690
    %706 = vrot.lane.b32.xlu0 %v703, 96
    %v707 = vpop.permute.xlu0 %706
    %v709 = vmul.f32 %v704, %v707
    %v711 = vrot.slane %v632, 6
    %v713 = vmul.f32 %v690, %v711
    %v714 = vadd.f32 %v709, %v713
    %v715 = vpack.c.bf16 %v714, %v714
    %v717 = vrot.slane %v715, 2
    %718 = vrot.lane.b32.xlu0 %v717, 96
    %v719 = vpop.permute.xlu0 %718
    %v721 = vsel %vm150, %v719, 0
    %723 = vmatprep.subr.bf16.mxu0 0
    %724 = vmatpush1.bf16.msra.mxu0 %v147
    %725 = vmatprep.subr.bf16.mxu0 0
    %726 = vmatpush1.bf16.msra.mxu0 %v148
    %727 = vmatprep.subr.bf16.mxu0 0
    %728 = vmatpush1.bf16.msra.mxu0 0
    %729 = vmatprep.subr.bf16.mxu0 0
    %730 = vmatpush1.bf16.msra.mxu0 0
    %731 = vmatprep.subr.bf16.mxu0 0
    %732 = vmatpush1.bf16.msra.mxu0 0
    %733 = vmatprep.subr.bf16.mxu0 0
    %734 = vmatpush1.bf16.msra.mxu0 0
    %735 = vmatprep.subr.bf16.mxu0 0
    %736 = vmatpush1.bf16.msra.mxu0 0
    %737 = vmatprep.subr.bf16.mxu0 0
    %738 = vmatpush1.bf16.msra.mxu0 0
    %739 = vmatprep.subr.bf16.mxu0 0
    %740 = vmatpush1.bf16.msra.mxu0 0
    %741 = vmatprep.subr.bf16.mxu0 0
    %742 = vmatpush1.bf16.msra.mxu0 0
    %743 = vmatprep.subr.bf16.mxu0 0
    %744 = vmatpush1.bf16.msra.mxu0 0
    %745 = vmatprep.subr.bf16.mxu0 0
    %746 = vmatpush1.bf16.msra.mxu0 0
    %747 = vmatprep.subr.bf16.mxu0 0
    %748 = vmatpush1.bf16.msra.mxu0 0
    %749 = vmatprep.subr.bf16.mxu0 0
    %750 = vmatpush1.bf16.msra.mxu0 0
    %751 = vmatprep.subr.bf16.mxu0 0
    %752 = vmatpush1.bf16.msra.mxu0 0
    %753 = vmatprep.subr.bf16.mxu0 0
    %754 = vmatpush1.bf16.msra.mxu0 0
    %755 = vmatprep.mubr.bf16.mxu0 0
    %756 = vmatmul.mubr.bf16.gmra.mrb[0].mxu0 %v721
    %v757 = vpop.f32.mrb[0].mxu0
    %v758 = vadd.f32 0.0, %v757
    %v759 = vpop.f32.mrb[0].mxu0
    %v760 = vpop.f32.mrb[0].mxu0
    %v761 = vpop.f32.mrb[0].mxu0
    %762 = vdwg.mxu0
    %v764 = vrot.slane %v758, 2
    %v766 = vadd.f32 %v140, %v764
    %v767 = vxor.u32 %v766, 2147483648
    %v768 = vmul.f32 %v767, 1.442695
    %v769 = vpow.pop %v768
    %v770 = vadd.f32 %v769, 1.0
    %v771 = vrcp.pop %v770
    %v772 = vmul.f32 1.0, %v771
    %v773 = vadd.f32 %v758, %v207
    %v775 = vrot.slane %v773, 2
    %776 = vrot.lane.b32.xlu0 %v775, 64
    %v777 = vpop.permute.xlu0 %776
    %v779 = vmul.f32 %v772, %v777
    %781 = vrot.lane.b32.xlu0 %v779, 64
    %v782 = vpop.permute.xlu0 %781
    %v784 = vadd.f32 %v140, %v782
    %v785 = vtanh.pop %v784
    %v786 = vsub.f32 1.0, %v772
    %788 = vrot.lane.b32.xlu0 %v785, 96
    %v789 = vpop.permute.xlu0 %788
    %v791 = vmul.f32 %v786, %v789
    %v793 = vrot.slane %v714, 6
    %v795 = vmul.f32 %v772, %v793
    %v796 = vadd.f32 %v791, %v795
    %v797 = vld [vmem:[%s1] sm:$0xff]
    %v798 = vld [vmem:[%s1 + $0x8] sm:$0xff]
    %v799 = vld [vmem:[#allocation2 + $0x68] sm:$0xff]
    %v800 = vld [vmem:[#allocation2 + $0x70] sm:$0xff]
    %v801 = vld [vmem:[#allocation2 + $0x78] sm:$0xff]
    %v802 = vld [vmem:[#allocation2 + $0x80] sm:$0xff]
    %v803 = vld [vmem:[#allocation2 + $0x88] sm:$0x1]
    %v804 = vlaneseq
    %v805 = vshrl.u32 %v804, 7
    %v806 = vsub.s32 0, %v805
    %v807 = vrot.slane %v803, %v806
    %v809 = vsel %vm150, %v797, 0
    %v812 = vsel %vm150, %v798, 0
    %814 = vmatprep.subr.mxu0 0.0
    %815 = vmatpush1.msra.mxu0 %v799
    %816 = vmatprep.subr.mxu0 0.0
    %817 = vmatpush1.msra.mxu0 %v800
    %818 = vmatprep.subr.mxu0 0.0
    %819 = vmatpush1.msra.mxu0 %v801
    %820 = vmatprep.subr.mxu0 0.0
    %821 = vmatpush1.msra.mxu0 %v802
    %822 = vmatprep.subr.mxu0 0.0
    %823 = vmatpush1.msra.mxu0 0.0
    %824 = vmatprep.subr.mxu0 0.0
    %825 = vmatpush1.msra.mxu0 0.0
    %826 = vmatprep.subr.mxu0 0.0
    %827 = vmatpush1.msra.mxu0 0.0
    %828 = vmatprep.subr.mxu0 0.0
    %829 = vmatpush1.msra.mxu0 0.0
    %830 = vmatprep.subr.mxu0 0.0
    %831 = vmatpush1.msra.mxu0 0.0
    %832 = vmatprep.subr.mxu0 0.0
    %833 = vmatpush1.msra.mxu0 0.0
    %834 = vmatprep.subr.mxu0 0.0
    %835 = vmatpush1.msra.mxu0 0.0
    %836 = vmatprep.subr.mxu0 0.0
    %837 = vmatpush1.msra.mxu0 0.0
    %838 = vmatprep.subr.mxu0 0.0
    %839 = vmatpush1.msra.mxu0 0.0
    %840 = vmatprep.subr.mxu0 0.0
    %841 = vmatpush1.msra.mxu0 0.0
    %842 = vmatprep.subr.mxu0 0.0
    %843 = vmatpush1.msra.mxu0 0.0
    %844 = vmatprep.subr.mxu0 0.0
    %845 = vmatpush1.msra.mxu0 0.0
    %846 = vmatprep.subr.mxu0 0.0
    %847 = vmatpush1.msra.mxu0 0.0
    %848 = vmatprep.subr.mxu0 0.0
    %849 = vmatpush1.msra.mxu0 0.0
    %850 = vmatprep.subr.mxu0 0.0
    %851 = vmatpush1.msra.mxu0 0.0
    %852 = vmatprep.subr.mxu0 0.0
    %853 = vmatpush1.msra.mxu0 0.0
    %854 = vmatprep.subr.mxu0 0.0
    %855 = vmatpush1.msra.mxu0 0.0
    %856 = vmatprep.subr.mxu0 0.0
    %857 = vmatpush1.msra.mxu0 0.0
    %858 = vmatprep.subr.mxu0 0.0
    %859 = vmatpush1.msra.mxu0 0.0
    %860 = vmatprep.subr.mxu0 0.0
    %861 = vmatpush1.msra.mxu0 0.0
    %862 = vmatprep.subr.mxu0 0.0
    %863 = vmatpush1.msra.mxu0 0.0
    %864 = vmatprep.subr.mxu0 0.0
    %865 = vmatpush1.msra.mxu0 0.0
    %866 = vmatprep.subr.mxu0 0.0
    %867 = vmatpush1.msra.mxu0 0.0
    %868 = vmatprep.subr.mxu0 0.0
    %869 = vmatpush1.msra.mxu0 0.0
    %870 = vmatprep.subr.mxu0 0.0
    %871 = vmatpush1.msra.mxu0 0.0
    %872 = vmatprep.subr.mxu0 0.0
    %873 = vmatpush1.msra.mxu0 0.0
    %874 = vmatprep.subr.mxu0 0.0
    %875 = vmatpush1.msra.mxu0 0.0
    %876 = vmatprep.subr.mxu0 0.0
    %877 = vmatpush1.msra.mxu0 0.0
    %878 = vmatprep.mubr.f32.mxu0 0.0
    %879 = vmatmul.mubr.f32.gmra.mrb[0].mxu0 %v809
    %v880 = vpop.f32.mrb[0].mxu0
    %v881 = vadd.f32 %v807, %v880
    %v882 = vpop.f32.mrb[0].mxu0
    %883 = vmatprep.mubr.f32.mxu0 0.0
    %884 = vmatmul.mubr.f32.gmra.mrb[0].mxu0 %v812
    %v885 = vpop.f32.mrb[0].mxu0
    %v886 = vadd.f32 %v807, %v885
    %v887 = vpop.f32.mrb[0].mxu0
    %888 = vdwg.mxu0
    %v889 = vmax.f32 %v881, 0.0
    %v890 = vmax.f32 %v886, 0.0
    %v891 = vld [vmem:[#allocation2 + $0x90] sm:$0xff]
    %v892 = vld [vmem:[#allocation2 + $0x98] sm:$0xff]
    %v893 = vld [vmem:[#allocation2 + $0xa0] sm:$0xff]
    %v894 = vld [vmem:[#allocation2 + $0xa8] sm:$0xff]
    %v895 = vld [vmem:[#allocation2 + $0xb0] sm:$0x1]
    %v896 = vlaneseq
    %v897 = vshrl.u32 %v896, 7
    %v898 = vsub.s32 0, %v897
    %v899 = vrot.slane %v895, %v898
    %v901 = vrot.slane %v796, 6
    %902 = vrot.lane.b32.xlu0 %v901, 96
    %v903 = vpop.permute.xlu0 %902
    %v904 = vsel %vm150, %v903, 0
    %906 = vmatprep.subr.mxu0 0.0
    %907 = vmatpush1.msra.mxu0 %v891
    %908 = vmatprep.subr.mxu0 0.0
    %909 = vmatpush1.msra.mxu0 %v892
    %910 = vmatprep.subr.mxu0 0.0
    %911 = vmatpush1.msra.mxu0 %v893
    %912 = vmatprep.subr.mxu0 0.0
    %913 = vmatpush1.msra.mxu0 %v894
    %914 = vmatprep.subr.mxu0 0.0
    %915 = vmatpush1.msra.mxu0 0.0
    %916 = vmatprep.subr.mxu0 0.0
    %917 = vmatpush1.msra.mxu0 0.0
    %918 = vmatprep.subr.mxu0 0.0
    %919 = vmatpush1.msra.mxu0 0.0
    %920 = vmatprep.subr.mxu0 0.0
    %921 = vmatpush1.msra.mxu0 0.0
    %922 = vmatprep.subr.mxu0 0.0
    %923 = vmatpush1.msra.mxu0 0.0
    %924 = vmatprep.subr.mxu0 0.0
    %925 = vmatpush1.msra.mxu0 0.0
    %926 = vmatprep.subr.mxu0 0.0
    %927 = vmatpush1.msra.mxu0 0.0
    %928 = vmatprep.subr.mxu0 0.0
    %929 = vmatpush1.msra.mxu0 0.0
    %930 = vmatprep.subr.mxu0 0.0
    %931 = vmatpush1.msra.mxu0 0.0
    %932 = vmatprep.subr.mxu0 0.0
    %933 = vmatpush1.msra.mxu0 0.0
    %934 = vmatprep.subr.mxu0 0.0
    %935 = vmatpush1.msra.mxu0 0.0
    %936 = vmatprep.subr.mxu0 0.0
    %937 = vmatpush1.msra.mxu0 0.0
    %938 = vmatprep.subr.mxu0 0.0
    %939 = vmatpush1.msra.mxu0 0.0
    %940 = vmatprep.subr.mxu0 0.0
    %941 = vmatpush1.msra.mxu0 0.0
    %942 = vmatprep.subr.mxu0 0.0
    %943 = vmatpush1.msra.mxu0 0.0
    %944 = vmatprep.subr.mxu0 0.0
    %945 = vmatpush1.msra.mxu0 0.0
    %946 = vmatprep.subr.mxu0 0.0
    %947 = vmatpush1.msra.mxu0 0.0
    %948 = vmatprep.subr.mxu0 0.0
    %949 = vmatpush1.msra.mxu0 0.0
    %950 = vmatprep.subr.mxu0 0.0
    %951 = vmatpush1.msra.mxu0 0.0
    %952 = vmatprep.subr.mxu0 0.0
    %953 = vmatpush1.msra.mxu0 0.0
    %954 = vmatprep.subr.mxu0 0.0
    %955 = vmatpush1.msra.mxu0 0.0
    %956 = vmatprep.subr.mxu0 0.0
    %957 = vmatpush1.msra.mxu0 0.0
    %958 = vmatprep.subr.mxu0 0.0
    %959 = vmatpush1.msra.mxu0 0.0
    %960 = vmatprep.subr.mxu0 0.0
    %961 = vmatpush1.msra.mxu0 0.0
    %962 = vmatprep.subr.mxu0 0.0
    %963 = vmatpush1.msra.mxu0 0.0
    %964 = vmatprep.subr.mxu0 0.0
    %965 = vmatpush1.msra.mxu0 0.0
    %966 = vmatprep.subr.mxu0 0.0
    %967 = vmatpush1.msra.mxu0 0.0
    %968 = vmatprep.subr.mxu0 0.0
    %969 = vmatpush1.msra.mxu0 0.0
    %970 = vmatprep.mubr.f32.mxu0 0.0
    %971 = vmatmul.mubr.f32.gmra.mrb[0].mxu0 %v904
    %v972 = vpop.f32.mrb[0].mxu0
    %v973 = vadd.f32 %v899, %v972
    %v974 = vpop.f32.mrb[0].mxu0
    %975 = vdwg.mxu0
    %v976 = vmax.f32 %v973, 0.0
    %v977 = vld [vmem:[#allocation2 + $0xb8] sm:$0x1]
    %v978 = vlaneseq
    %v979 = vshrl.u32 %v978, 7
    %v980 = vsub.s32 0, %v979
    %v981 = vrot.slane %v976, %v980
    %v982 = vmul.f32 %v889, %v981
    %v983 = vlaneseq
    %v984 = vshrl.u32 %v983, 7
    %v985 = vsub.s32 0, %v984
    %v986 = vrot.slane %v977, %v985
    %v987 = vmul.f32 %v982, %v986
    %v988 = vsel %vm150, %v987, 0.0
    %989 = vadd.xlane.f32.xlu0 %v988
    %v990 = vpop.xlane.xlu0 %989
    %v991 = vrot.slane %v990, 4
    %v992 = vmax.f32 %v990, %v991
    %v993 = vrot.slane %v992, 2
    %v994 = vmax.f32 %v992, %v993
    %v995 = vrot.slane %v994, 1
    %v996 = vmax.f32 %v994, %v995
    %v997 = vsub.f32 %v990, %v996
    %v998 = vmul.f32 %v997, 1.442695
    %v999 = vpow.pop %v998
    %v1000 = vrot.slane %v999, 4
    %v1001 = vadd.f32 %v999, %v1000
    %v1002 = vrot.slane %v1001, 2
    %v1003 = vadd.f32 %v1001, %v1002
    %v1004 = vrot.slane %v1003, 1
    %v1005 = vadd.f32 %v1003, %v1004
    %v1006 = vrcp.pop %v1005
    %v1007 = vmul.f32 %v999, %v1006
    %v1008 = vmul.f32 %v1007, %v797
    %v1009 = vsel %vm150, %v1008, 0.0
    %v1010 = vrot.slane %v1009, 4
    %v1011 = vadd.f32 %v1009, %v1010
    %v1012 = vrot.slane %v1011, 2
    %v1013 = vadd.f32 %v1011, %v1012
    %v1014 = vrot.slane %v1013, 1
    %v1015 = vadd.f32 %v1013, %v1014
    %v1016 = vlaneseq
    %v1017 = vshrl.u32 %v1016, 7
    %v1018 = vsub.s32 1, %v1017
    %v1019 = vrot.slane %v976, %v1018
    %v1020 = vmul.f32 %v890, %v1019
    %v1021 = vmul.f32 %v1020, %v986
    %v1022 = vsel %vm150, %v1021, 0.0
    %1023 = vadd.xlane.f32.xlu0 %v1022
    %v1024 = vpop.xlane.xlu0 %1023
    %v1025 = vrot.slane %v1024, 4
    %v1026 = vmax.f32 %v1024, %v1025
    %v1027 = vrot.slane %v1026, 2
    %v1028 = vmax.f32 %v1026, %v1027
    %v1029 = vrot.slane %v1028, 1
    %v1030 = vmax.f32 %v1028, %v1029
    %v1031 = vsub.f32 %v1024, %v1030
    %v1032 = vmul.f32 %v1031, 1.442695
    %v1033 = vpow.pop %v1032
    %v1034 = vrot.slane %v1033, 4
    %v1035 = vadd.f32 %v1033, %v1034
    %v1036 = vrot.slane %v1035, 2
    %v1037 = vadd.f32 %v1035, %v1036
    %v1038 = vrot.slane %v1037, 1
    %v1039 = vadd.f32 %v1037, %v1038
    %v1040 = vrcp.pop %v1039
    %v1041 = vmul.f32 %v1033, %v1040
    %v1042 = vmul.f32 %v1041, %v798
    %v1043 = vsel %vm150, %v1042, 0.0
    %v1044 = vrot.slane %v1043, 4
    %v1045 = vadd.f32 %v1043, %v1044
    %v1046 = vrot.slane %v1045, 2
    %v1047 = vadd.f32 %v1045, %v1046
    %v1048 = vrot.slane %v1047, 1
    %v1049 = vadd.f32 %v1047, %v1048
    %vm1050 = vcmask 1040384
    %v1051 = vsel %vm1050, %v1015, %v1049
    %v1052 = vld [vmem:[#allocation2 + $0xc0] sm:$0xff]
    %v1053 = vld [vmem:[#allocation2 + $0xc8] sm:$0xff]
    %v1054 = vld [vmem:[#allocation2 + $0xd0] sm:$0xff]
    %v1055 = vld [vmem:[#allocation2 + $0xd8] sm:$0xff]
    %v1056 = vld [vmem:[#allocation2 + $0xe0] sm:$0x1]
    %v1057 = vlaneseq
    %v1058 = vshrl.u32 %v1057, 7
    %v1059 = vsub.s32 0, %v1058
    %v1060 = vrot.slane %v1056, %v1059
    %v1062 = vsel %vm150, %v1051, 0
    %1064 = vmatprep.subr.mxu0 0.0
    %1065 = vmatpush1.msra.mxu0 %v1052
    %1066 = vmatprep.subr.mxu0 0.0
    %1067 = vmatpush1.msra.mxu0 %v1053
    %1068 = vmatprep.subr.mxu0 0.0
    %1069 = vmatpush1.msra.mxu0 %v1054
    %1070 = vmatprep.subr.mxu0 0.0
    %1071 = vmatpush1.msra.mxu0 %v1055
    %1072 = vmatprep.subr.mxu0 0.0
    %1073 = vmatpush1.msra.mxu0 0.0
    %1074 = vmatprep.subr.mxu0 0.0
    %1075 = vmatpush1.msra.mxu0 0.0
    %1076 = vmatprep.subr.mxu0 0.0
    %1077 = vmatpush1.msra.mxu0 0.0
    %1078 = vmatprep.subr.mxu0 0.0
    %1079 = vmatpush1.msra.mxu0 0.0
    %1080 = vmatprep.subr.mxu0 0.0
    %1081 = vmatpush1.msra.mxu0 0.0
    %1082 = vmatprep.subr.mxu0 0.0
    %1083 = vmatpush1.msra.mxu0 0.0
    %1084 = vmatprep.subr.mxu0 0.0
    %1085 = vmatpush1.msra.mxu0 0.0
    %1086 = vmatprep.subr.mxu0 0.0
    %1087 = vmatpush1.msra.mxu0 0.0
    %1088 = vmatprep.subr.mxu0 0.0
    %1089 = vmatpush1.msra.mxu0 0.0
    %1090 = vmatprep.subr.mxu0 0.0
    %1091 = vmatpush1.msra.mxu0 0.0
    %1092 = vmatprep.subr.mxu0 0.0
    %1093 = vmatpush1.msra.mxu0 0.0
    %1094 = vmatprep.subr.mxu0 0.0
    %1095 = vmatpush1.msra.mxu0 0.0
    %1096 = vmatprep.subr.mxu0 0.0
    %1097 = vmatpush1.msra.mxu0 0.0
    %1098 = vmatprep.subr.mxu0 0.0
    %1099 = vmatpush1.msra.mxu0 0.0
    %1100 = vmatprep.subr.mxu0 0.0
    %1101 = vmatpush1.msra.mxu0 0.0
    %1102 = vmatprep.subr.mxu0 0.0
    %1103 = vmatpush1.msra.mxu0 0.0
    %1104 = vmatprep.subr.mxu0 0.0
    %1105 = vmatpush1.msra.mxu0 0.0
    %1106 = vmatprep.subr.mxu0 0.0
    %1107 = vmatpush1.msra.mxu0 0.0
    %1108 = vmatprep.subr.mxu0 0.0
    %1109 = vmatpush1.msra.mxu0 0.0
    %1110 = vmatprep.subr.mxu0 0.0
    %1111 = vmatpush1.msra.mxu0 0.0
    %1112 = vmatprep.subr.mxu0 0.0
    %1113 = vmatpush1.msra.mxu0 0.0
    %1114 = vmatprep.subr.mxu0 0.0
    %1115 = vmatpush1.msra.mxu0 0.0
    %1116 = vmatprep.subr.mxu0 0.0
    %1117 = vmatpush1.msra.mxu0 0.0
    %1118 = vmatprep.subr.mxu0 0.0
    %1119 = vmatpush1.msra.mxu0 0.0
    %1120 = vmatprep.subr.mxu0 0.0
    %1121 = vmatpush1.msra.mxu0 0.0
    %1122 = vmatprep.subr.mxu0 0.0
    %1123 = vmatpush1.msra.mxu0 0.0
    %1124 = vmatprep.subr.mxu0 0.0
    %1125 = vmatpush1.msra.mxu0 0.0
    %1126 = vmatprep.subr.mxu0 0.0
    %1127 = vmatpush1.msra.mxu0 0.0
    %1128 = vmatprep.mubr.f32.mxu0 0.0
    %1129 = vmatmul.mubr.f32.gmra.mrb[0].mxu0 %v1062
    %v1130 = vpop.f32.mrb[0].mxu0
    %v1131 = vadd.f32 %v1060, %v1130
    %v1132 = vpop.f32.mrb[0].mxu0
    %1133 = vdwg.mxu0
    %v1134 = vmax.f32 %v1131, 0.0
    %1136 = vrot.lane.b32.xlu0 %v1134, 32
    %v1137 = vpop.permute.xlu0 %1136
    %v1139 = vmul.f32 %v976, %v1137
    %v1140 = vld [vmem:[#allocation2 + $0xe8] sm:$0xff]
    %v1141 = vld [vmem:[#allocation2 + $0xf0] sm:$0xff]
    %v1142 = vld [vmem:[#allocation2 + $0xf8] sm:$0xff]
    %v1143 = vld [vmem:[#allocation2 + $0x100] sm:$0xff]
    %v1144 = vld [vmem:[#allocation2 + $0x108] sm:$0x1]
    %v1145 = vlaneseq
    %v1146 = vshrl.u32 %v1145, 7
    %v1147 = vsub.s32 0, %v1146
    %v1148 = vrot.slane %v1144, %v1147
    %1150 = vrot.lane.b32.xlu0 %v1139, 96
    %v1151 = vpop.permute.xlu0 %1150
    %v1152 = vsel %vm150, %v1151, 0
    %1154 = vmatprep.subr.mxu0 0.0
    %1155 = vmatpush1.msra.mxu0 %v1140
    %1156 = vmatprep.subr.mxu0 0.0
    %1157 = vmatpush1.msra.mxu0 %v1141
    %1158 = vmatprep.subr.mxu0 0.0
    %1159 = vmatpush1.msra.mxu0 %v1142
    %1160 = vmatprep.subr.mxu0 0.0
    %1161 = vmatpush1.msra.mxu0 %v1143
    %1162 = vmatprep.subr.mxu0 0.0
    %1163 = vmatpush1.msra.mxu0 0.0
    %1164 = vmatprep.subr.mxu0 0.0
    %1165 = vmatpush1.msra.mxu0 0.0
    %1166 = vmatprep.subr.mxu0 0.0
    %1167 = vmatpush1.msra.mxu0 0.0
    %1168 = vmatprep.subr.mxu0 0.0
    %1169 = vmatpush1.msra.mxu0 0.0
    %1170 = vmatprep.subr.mxu0 0.0
    %1171 = vmatpush1.msra.mxu0 0.0
    %1172 = vmatprep.subr.mxu0 0.0
    %1173 = vmatpush1.msra.mxu0 0.0
    %1174 = vmatprep.subr.mxu0 0.0
    %1175 = vmatpush1.msra.mxu0 0.0
    %1176 = vmatprep.subr.mxu0 0.0
    %1177 = vmatpush1.msra.mxu0 0.0
    %1178 = vmatprep.subr.mxu0 0.0
    %1179 = vmatpush1.msra.mxu0 0.0
    %1180 = vmatprep.subr.mxu0 0.0
    %1181 = vmatpush1.msra.mxu0 0.0
    %1182 = vmatprep.subr.mxu0 0.0
    %1183 = vmatpush1.msra.mxu0 0.0
    %1184 = vmatprep.subr.mxu0 0.0
    %1185 = vmatpush1.msra.mxu0 0.0
    %1186 = vmatprep.subr.mxu0 0.0
    %1187 = vmatpush1.msra.mxu0 0.0
    %1188 = vmatprep.subr.mxu0 0.0
    %1189 = vmatpush1.msra.mxu0 0.0
    %1190 = vmatprep.subr.mxu0 0.0
    %1191 = vmatpush1.msra.mxu0 0.0
    %1192 = vmatprep.subr.mxu0 0.0
    %1193 = vmatpush1.msra.mxu0 0.0
    %1194 = vmatprep.subr.mxu0 0.0
    %1195 = vmatpush1.msra.mxu0 0.0
    %1196 = vmatprep.subr.mxu0 0.0
    %1197 = vmatpush1.msra.mxu0 0.0
    %1198 = vmatprep.subr.mxu0 0.0
    %1199 = vmatpush1.msra.mxu0 0.0
    %1200 = vmatprep.subr.mxu0 0.0
    %1201 = vmatpush1.msra.mxu0 0.0
    %1202 = vmatprep.subr.mxu0 0.0
    %1203 = vmatpush1.msra.mxu0 0.0
    %1204 = vmatprep.subr.mxu0 0.0
    %1205 = vmatpush1.msra.mxu0 0.0
    %1206 = vmatprep.subr.mxu0 0.0
    %1207 = vmatpush1.msra.mxu0 0.0
    %1208 = vmatprep.subr.mxu0 0.0
    %1209 = vmatpush1.msra.mxu0 0.0
    %1210 = vmatprep.subr.mxu0 0.0
    %1211 = vmatpush1.msra.mxu0 0.0
    %1212 = vmatprep.subr.mxu0 0.0
    %1213 = vmatpush1.msra.mxu0 0.0
    %1214 = vmatprep.subr.mxu0 0.0
    %1215 = vmatpush1.msra.mxu0 0.0
    %1216 = vmatprep.subr.mxu0 0.0
    %1217 = vmatpush1.msra.mxu0 0.0
    %1218 = vmatprep.mubr.f32.mxu0 0.0
    %1219 = vmatmul.mubr.f32.gmra.mrb[0].mxu0 %v1152
    %v1220 = vpop.f32.mrb[0].mxu0
    %v1221 = vadd.f32 %v1148, %v1220
    %v1222 = vpop.f32.mrb[0].mxu0
    %1223 = vdwg.mxu0
    %v1224 = vmax.f32 %v1221, 0.0
    %v1225 = vld [vmem:[#allocation2 + $0x110] sm:$0xff]
    %v1226 = vld [vmem:[#allocation2 + $0x118] sm:$0xff]
    %v1227 = vld [vmem:[#allocation2 + $0x120] sm:$0xff]
    %v1228 = vld [vmem:[#allocation2 + $0x128] sm:$0xff]
    %v1229 = vld [vmem:[#allocation2 + $0x130] sm:$0xff]
    %v1230 = vld [vmem:[#allocation2 + $0x138] sm:$0xff]
    %v1231 = vld [vmem:[#allocation2 + $0x140] sm:$0xff]
    %v1232 = vld [vmem:[#allocation2 + $0x148] sm:$0xff]
    %v1233 = vld [vmem:[#allocation2 + $0x150] sm:$0x1]
    %v1234 = vlaneseq
    %v1235 = vshrl.u32 %v1234, 7
    %v1236 = vsub.s32 0, %v1235
    %v1237 = vrot.slane %v1233, %v1236
    %vm1238 = vcmask 523264
    %v1240 = vsel %vm1238, %v1224, 0
    %1242 = vmatprep.subr.mxu0 0.0
    %1243 = vmatpush1.msra.mxu0 %v1225
    %1244 = vmatprep.subr.mxu0 0.0
    %1245 = vmatpush1.msra.mxu0 %v1226
    %1246 = vmatprep.subr.mxu0 0.0
    %1247 = vmatpush1.msra.mxu0 %v1227
    %1248 = vmatprep.subr.mxu0 0.0
    %1249 = vmatpush1.msra.mxu0 %v1228
    %1250 = vmatprep.subr.mxu0 0.0
    %1251 = vmatpush1.msra.mxu0 %v1229
    %1252 = vmatprep.subr.mxu0 0.0
    %1253 = vmatpush1.msra.mxu0 %v1230
    %1254 = vmatprep.subr.mxu0 0.0
    %1255 = vmatpush1.msra.mxu0 %v1231
    %1256 = vmatprep.subr.mxu0 0.0
    %1257 = vmatpush1.msra.mxu0 %v1232
    %1258 = vmatprep.subr.mxu0 0.0
    %1259 = vmatpush1.msra.mxu0 0.0
    %1260 = vmatprep.subr.mxu0 0.0
    %1261 = vmatpush1.msra.mxu0 0.0
    %1262 = vmatprep.subr.mxu0 0.0
    %1263 = vmatpush1.msra.mxu0 0.0
    %1264 = vmatprep.subr.mxu0 0.0
    %1265 = vmatpush1.msra.mxu0 0.0
    %1266 = vmatprep.subr.mxu0 0.0
    %1267 = vmatpush1.msra.mxu0 0.0
    %1268 = vmatprep.subr.mxu0 0.0
    %1269 = vmatpush1.msra.mxu0 0.0
    %1270 = vmatprep.subr.mxu0 0.0
    %1271 = vmatpush1.msra.mxu0 0.0
    %1272 = vmatprep.subr.mxu0 0.0
    %1273 = vmatpush1.msra.mxu0 0.0
    %1274 = vmatprep.subr.mxu0 0.0
    %1275 = vmatpush1.msra.mxu0 0.0
    %1276 = vmatprep.subr.mxu0 0.0
    %1277 = vmatpush1.msra.mxu0 0.0
    %1278 = vmatprep.subr.mxu0 0.0
    %1279 = vmatpush1.msra.mxu0 0.0
    %1280 = vmatprep.subr.mxu0 0.0
    %1281 = vmatpush1.msra.mxu0 0.0
    %1282 = vmatprep.subr.mxu0 0.0
    %1283 = vmatpush1.msra.mxu0 0.0
    %1284 = vmatprep.subr.mxu0 0.0
    %1285 = vmatpush1.msra.mxu0 0.0
    %1286 = vmatprep.subr.mxu0 0.0
    %1287 = vmatpush1.msra.mxu0 0.0
    %1288 = vmatprep.subr.mxu0 0.0
    %1289 = vmatpush1.msra.mxu0 0.0
    %1290 = vmatprep.subr.mxu0 0.0
    %1291 = vmatpush1.msra.mxu0 0.0
    %1292 = vmatprep.subr.mxu0 0.0
    %1293 = vmatpush1.msra.mxu0 0.0
    %1294 = vmatprep.subr.mxu0 0.0
    %1295 = vmatpush1.msra.mxu0 0.0
    %1296 = vmatprep.subr.mxu0 0.0
    %1297 = vmatpush1.msra.mxu0 0.0
    %1298 = vmatprep.subr.mxu0 0.0
    %1299 = vmatpush1.msra.mxu0 0.0
    %1300 = vmatprep.subr.mxu0 0.0
    %1301 = vmatpush1.msra.mxu0 0.0
    %1302 = vmatprep.subr.mxu0 0.0
    %1303 = vmatpush1.msra.mxu0 0.0
    %1304 = vmatprep.subr.mxu0 0.0
    %1305 = vmatpush1.msra.mxu0 0.0
    %1306 = vmatprep.mubr.f32.mxu0 0.0
    %1307 = vmatmul.mubr.f32.gmra.mrb[0].mxu0 %v1240
    %v1308 = vpop.f32.mrb[0].mxu0
    %v1309 = vadd.f32 %v1237, %v1308
    %v1310 = vpop.f32.mrb[0].mxu0
    %1311 = vdwg.mxu0
    %1314 = vrot.lane.b32.xlu0 %v1309, 32
    %v1315 = vpop.permute.xlu0 %1314
    %v1317 = vsel %vm150, %v1151, %v1315
    %vm1318 = vcmask 386048
    %1319 = vst.msk [vmem:[%s3] sm:$0x3] %vm1318, %v1317
    // Predicated region
    $region18: #{base_model_forward.1} parent=1 // pred_check
      _
    $region19: #{base_model_forward.1} parent=1 // pred_check_branch
      %1321 = sbr.rel (0) target = $region21
    $region20: #{base_model_forward.1} parent=1 // pred_region
      _
    $region21: #{base_model_forward.1} parent=1 // pred_fallthru
      _
    // Predicated region
    $region22: #{base_model_forward.1} parent=1 // pred_check
      _
    $region23: #{base_model_forward.1} parent=1 // pred_check_branch
      %1323 = sbr.rel (0) target = $region25
    $region24: #{base_model_forward.1} parent=1 // pred_region
      _
    $region25: #{base_model_forward.1} parent=1 // pred_fallthru
      _
    %1324 = vsyncpa [#allocation3], 1

</llo_original>
